<compile_context>
chip_gen: v5e
topology: v5e:2x2
jax: 0.10.0
libtpu: 0.0.40
codegen_flags: <defaults>
</compile_context>

<pallas_src>
import functools

import jax
import jax.numpy as jnp
from jax import lax
from jax.experimental import pallas as pl
from jax.experimental.pallas import tpu as pltpu

EPS = 1e-5


# ----------------------------------------------------------------------------
# VMEM budgeting helpers
# ----------------------------------------------------------------------------
def _vmem_limit_bytes():
    """Scoped-VMEM limit requested from Mosaic: ~3/4 of physical VMEM of the
    current generation (v5e/v6e: 128 MiB, v7x: 64 MiB), capped at 96 MiB."""
    cap = 64 * 1024 * 1024                       # conservative default (v7x)
    try:
        info = pltpu.get_tpu_info()
        cap = int(getattr(info, "vmem_capacity_bytes", cap)) or cap
    except Exception:
        pass
    return int(min(cap * 3 // 4, 96 * 1024 * 1024))


def _pick_tile_l(L, bytes_per_lane, fixed_bytes, budget_bytes, max_tile_l):
    """Largest lane tile that is a multiple of 128, divides L, respects
    max_tile_l and keeps the estimated working set (double-buffered tiles +
    in-kernel temporaries) inside budget_bytes."""
    if L % 128 != 0:
        return L                                 # tiny / odd spatial: one tile
    avail = max(budget_bytes - fixed_bytes, 0)
    best, tl = 128, 128
    while tl <= min(L, max_tile_l):
        if L % tl == 0 and tl * bytes_per_lane <= avail:
            best = tl
        tl += 128
    return best


# ----------------------------------------------------------------------------
# Kernel 0:  per-channel sum / sum-of-squares of x in a single pass
# (BN1 batch statistics).  Accumulated in VMEM scratch over the spatial tiles,
# written once per image.
# ----------------------------------------------------------------------------
def _channel_stats_kernel(x_ref, ss_ref, sq_ref, acc_s, acc_q):
    l = pl.program_id(1)

    @pl.when(l == 0)
    def _():
        acc_s[...] = jnp.zeros_like(acc_s)
        acc_q[...] = jnp.zeros_like(acc_q)

    x = x_ref[...]                                               # (C, TL) f32
    acc_s[...] += jnp.sum(x, axis=1, keepdims=True)
    acc_q[...] += jnp.sum(x * x, axis=1, keepdims=True)

    @pl.when(l == pl.num_programs(1) - 1)
    def _():
        ss_ref[...] = acc_s[...]
        sq_ref[...] = acc_q[...]


def channel_stats(x, *, max_tile_l, vmem_limit):
    """x: (N, C, L) f32.  Returns per-image (N, C, 1) sum and sum-of-squares."""
    N, C, L = x.shape
    bpl = 2 * 4 * C + 8 * C                      # dbuf input + x, x*x temps
    tl = _pick_tile_l(L, bpl, 4 * C * 4, vmem_limit // 2, max_tile_l)
    num_l = L // tl
    return pl.pallas_call(
        _channel_stats_kernel,
        out_shape=(jax.ShapeDtypeStruct((N, C, 1), jnp.float32),
                   jax.ShapeDtypeStruct((N, C, 1), jnp.float32)),
        grid=(N, num_l),
        in_specs=[pl.BlockSpec((None, C, tl), lambda n, l: (n, 0, l))],
        out_specs=(pl.BlockSpec((None, C, 1), lambda n, l: (n, 0, 0)),
                   pl.BlockSpec((None, C, 1), lambda n, l: (n, 0, 0))),
        scratch_shapes=[pltpu.VMEM((C, 1), jnp.float32),
                        pltpu.VMEM((C, 1), jnp.float32)],
        compiler_params=pltpu.CompilerParams(
            dimension_semantics=("parallel", "arbitrary"),
            vmem_limit_bytes=vmem_limit),
    )(x)


# ----------------------------------------------------------------------------
# Kernel A:  y = W1 @ relu(x*scale1 + bias1)     (BN1-affine + ReLU + 1x1 conv)
# plus fused BN2 batch-statistic partials (sum / sum-sq of y), accumulated in
# VMEM scratch across spatial tiles and written once per image.
# ----------------------------------------------------------------------------
def _bn_relu_conv1x1_kernel(x_ref, s_ref, b_ref, w_ref, y_ref, ss_ref, sq_ref,
                            acc_s, acc_q, *, compute_dtype):
    l = pl.program_id(1)

    @pl.when(l == 0)
    def _():
        acc_s[...] = jnp.zeros_like(acc_s)
        acc_q[...] = jnp.zeros_like(acc_q)

    a = jnp.maximum(x_ref[...] * s_ref[...] + b_ref[...], 0.0)   # (Cin, TL) f32
    y = jnp.dot(w_ref[...], a.astype(compute_dtype),
                preferred_element_type=jnp.float32)              # (C1, TL) f32
    y_ref[...] = y.astype(y_ref.dtype)                           # bf16 store

    acc_s[...] += jnp.sum(y, axis=1, keepdims=True)              # (C1, 1)
    acc_q[...] += jnp.sum(y * y, axis=1, keepdims=True)

    @pl.when(l == pl.num_programs(1) - 1)
    def _():
        ss_ref[...] = acc_s[...]
        sq_ref[...] = acc_q[...]


def bn_relu_conv1x1(x, scale, bias, w, *, compute_dtype, max_tile_l, vmem_limit):
    """x: (N, Cin, L) f32; scale/bias: (Cin, 1) f32; w: (C1, Cin) compute_dtype.
    Returns y: (N, C1, L) compute_dtype and per-image (N, C1, 1) sum / sum-sq."""
    N, Cin, L = x.shape
    C1 = w.shape[0]
    cs = jnp.dtype(compute_dtype).itemsize
    bpl = (2 * 4 * Cin + 2 * cs * C1            # double-buffered x in / y out
           + (4 + cs) * Cin                     # a (f32) + a cast
           + 8 * C1)                            # y f32 + y*y temporaries
    fixed = 2 * C1 * Cin * cs + 16 * C1 + 16 * Cin
    tl = _pick_tile_l(L, bpl, fixed, vmem_limit // 2, max_tile_l)
    num_l = L // tl
    kernel = functools.partial(_bn_relu_conv1x1_kernel,
                               compute_dtype=compute_dtype)
    return pl.pallas_call(
        kernel,
        out_shape=(
            jax.ShapeDtypeStruct((N, C1, L), compute_dtype),
            jax.ShapeDtypeStruct((N, C1, 1), jnp.float32),
            jax.ShapeDtypeStruct((N, C1, 1), jnp.float32),
        ),
        grid=(N, num_l),
        in_specs=[
            pl.BlockSpec((None, Cin, tl), lambda n, l: (n, 0, l)),
            pl.BlockSpec((Cin, 1), lambda n, l: (0, 0)),
            pl.BlockSpec((Cin, 1), lambda n, l: (0, 0)),
            pl.BlockSpec((C1, Cin), lambda n, l: (0, 0)),
        ],
        out_specs=(
            pl.BlockSpec((None, C1, tl), lambda n, l: (n, 0, l)),
            pl.BlockSpec((None, C1, 1), lambda n, l: (n, 0, 0)),
            pl.BlockSpec((None, C1, 1), lambda n, l: (n, 0, 0)),
        ),
        scratch_shapes=[pltpu.VMEM((C1, 1), jnp.float32),
                        pltpu.VMEM((C1, 1), jnp.float32)],
        compiler_params=pltpu.CompilerParams(
            dimension_semantics=("parallel", "arbitrary"),
            vmem_limit_bytes=vmem_limit),
    )(x, scale, bias, w)


# ----------------------------------------------------------------------------
# Kernel B:  3x3 conv (pad=1) on relu(y*scale2 + bias2) in "shift-the-outputs"
# form:  u = W_stack(9*G_pad, C1) @ a(C1, L)  (one fat MXU pass), then per tap
# roll the (G_pad, L) slice of u on the lane axis, mask the padding/row-wrap
# positions and accumulate.  Optionally fuses the channel concat [z ; x].
# ----------------------------------------------------------------------------
def _bn_relu_conv3x3_kernel(*refs, W, G_pad, fuse_concat, compute_dtype):
    if fuse_concat:
        y_ref, x_ref, s_ref, b_ref, w_ref, m_ref, o_ref = refs
    else:
        y_ref, s_ref, b_ref, w_ref, m_ref, o_ref = refs
        x_ref = None
    L = y_ref.shape[-1]
    a = jnp.maximum(y_ref[...] * s_ref[...] + b_ref[...], 0.0)   # (C1, L) f32
    u = jnp.dot(w_ref[...], a.astype(compute_dtype),
                preferred_element_type=jnp.float32)              # (9*G_pad, L)
    m = m_ref[...]                                               # (9, L) f32
    res = None
    t = 0
    for kh in range(3):
        for kw in range(3):
            d = (kh - 1) * W + (kw - 1)          # flat spatial shift of the tap
            u_t = u[t * G_pad:(t + 1) * G_pad, :]                # aligned slice
            if d != 0:
                u_t = pltpu.roll(u_t, (-d) % L, 1)               # XLU, ~free
            c = u_t * m[t:t + 1, :]              # zero padding / row-wrap taps
            res = c if res is None else res + c
            t += 1
    if fuse_concat:
        # G == G_pad here, so the concat boundary is sublane-aligned.
        o_ref[...] = jnp.concatenate([res, x_ref[...]], axis=0)  # [z ; x]
    else:
        o_ref[...] = res                          # (G_pad, L); sliced lazily


def bn_relu_conv3x3(y, x, scale, bias, w_stack, masks, *, W, G, compute_dtype,
                    vmem_limit):
    """y: (N, C1, L); x: (N, Cin, L) f32; scale/bias: (C1, 1) f32;
    w_stack: (9*G_pad, C1) compute_dtype; masks: (9, L) f32.
    Returns ((N, G+Cin, L) f32, True) with the concat fused when G % 8 == 0,
    else ((N, G_pad, L) f32, False)."""
    N, C1, L = y.shape
    Cin = x.shape[1]
    G_pad = w_stack.shape[0] // 9
    fuse_concat = (G == G_pad)
    kernel = functools.partial(_bn_relu_conv3x3_kernel, W=W, G_pad=G_pad,
                               fuse_concat=fuse_concat,
                               compute_dtype=compute_dtype)
    in_specs = [pl.BlockSpec((None, C1, L), lambda n: (n, 0, 0))]
    operands = [y]
    if fuse_concat:
        in_specs.append(pl.BlockSpec((None, Cin, L), lambda n: (n, 0, 0)))
        operands.append(x)
        out_ch = G + Cin
    else:
        out_ch = G_pad
    in_specs += [
        pl.BlockSpec((C1, 1), lambda n: (0, 0)),
        pl.BlockSpec((C1, 1), lambda n: (0, 0)),
        pl.BlockSpec((9 * G_pad, C1), lambda n: (0, 0)),
        pl.BlockSpec((9, L), lambda n: (0, 0)),
    ]
    operands += [scale, bias, w_stack, masks]
    out = pl.pallas_call(
        kernel,
        out_shape=jax.ShapeDtypeStruct((N, out_ch, L), jnp.float32),
        grid=(N,),
        in_specs=in_specs,
        out_specs=pl.BlockSpec((None, out_ch, L), lambda n: (n, 0, 0)),
        compiler_params=pltpu.CompilerParams(
            dimension_semantics=("parallel",),
            vmem_limit_bytes=vmem_limit),
    )(*operands)
    return out, fuse_concat


def _make_shift_masks(H, W):
    """(9, H*W) f32 validity masks for the 3x3 taps (zero padding, pad=1), in
    (kh, kw) row-major tap order matching the stacked weight slab."""
    h = jnp.arange(H, dtype=jnp.int32)[:, None]
    w = jnp.arange(W, dtype=jnp.int32)[None, :]
    rows = []
    for kh in range(3):
        dh = kh - 1
        for kw in range(3):
            dw = kw - 1
            valid = ((h + dh >= 0) & (h + dh < H) &
                     (w + dw >= 0) & (w + dw < W))
            rows.append(valid.reshape(1, H * W))
    return jnp.concatenate(rows, axis=0).astype(jnp.float32)


# ----------------------------------------------------------------------------
# Full Bottleneck_D forward (Pallas path)
# ----------------------------------------------------------------------------
def bottleneck_d_forward(x_nchw, params, *, compute_dtype=jnp.bfloat16,
                         max_tile_l=2048):
    gamma1, beta1, w1 = params["gamma1"], params["beta1"], params["w1"]
    gamma2, beta2, w2 = params["gamma2"], params["beta2"], params["w2"]
    N, Cin, H, W = x_nchw.shape
    C1 = w1.shape[0]                  # 4 * growth_rate
    G = w2.shape[0]                   # growth_rate
    L = H * W
    vmem_limit = _vmem_limit_bytes()

    x = x_nchw.reshape(N, Cin, L).astype(jnp.float32)   # channel-major

    # BN1 batch statistics in ONE pass over x (biased variance, training mode).
    # Note: one-pass var = E[x^2] - mean^2 can lose precision vs two-pass when
    # mean^2 >> var; fine for normalized activations.
    ss1, sq1 = channel_stats(x, max_tile_l=max_tile_l, vmem_limit=vmem_limit)
    cnt = jnp.float32(N * L)
    mean1 = ss1.sum(axis=0)[:, 0] / cnt
    var1 = sq1.sum(axis=0)[:, 0] / cnt - mean1 * mean1
    inv1 = gamma1 * lax.rsqrt(var1 + EPS)
    scale1 = inv1.reshape(Cin, 1)
    bias1 = (beta1 - mean1 * inv1).reshape(Cin, 1)

    # 1x1 conv == (C1, Cin) matmul; weights pre-cast to the MXU input dtype.
    w1_mat = w1.reshape(C1, Cin).astype(compute_dtype)

    y, ss2, sq2 = bn_relu_conv1x1(x, scale1, bias1, w1_mat,
                                  compute_dtype=compute_dtype,
                                  max_tile_l=max_tile_l,
                                  vmem_limit=vmem_limit)

    # BN2 statistics from kernel A's fused partial sums (no extra pass over y).
    mean2 = ss2.sum(axis=0)[:, 0] / cnt
    var2 = sq2.sum(axis=0)[:, 0] / cnt - mean2 * mean2
    inv2 = gamma2 * lax.rsqrt(var2 + EPS)
    scale2 = inv2.reshape(C1, 1)
    bias2 = (beta2 - mean2 * inv2).reshape(C1, 1)

    # 3x3 conv weights OIHW (G, C1, 3, 3) -> vertically stacked per-tap slab
    # (9*G_pad, C1) in (kh, kw) row-major order; output rows padded per tap to
    # a sublane multiple so the per-tap slices of the MXU result stay aligned.
    G_pad = ((G + 7) // 8) * 8
    w_taps = jnp.transpose(w2, (2, 3, 0, 1)).reshape(9, G, C1)
    if G_pad != G:
        w_taps = jnp.pad(w_taps, ((0, 0), (0, G_pad - G), (0, 0)))
    w_stack = w_taps.reshape(9 * G_pad, C1).astype(compute_dtype)

    masks = _make_shift_masks(H, W)

    out, fused = bn_relu_conv3x3(y, x, scale2, bias2, w_stack, masks,
                                 W=W, G=G, compute_dtype=compute_dtype,
                                 vmem_limit=vmem_limit)
    if fused:
        # Kernel B already wrote [conv_out ; x]; (N, G+Cin, L) is NCHW-shaped.
        return out.reshape(N, G + Cin, H, W)
    # G not a sublane multiple: kernel wrote G_pad padded rows; the slice is
    # fused lazily into the XLA concat (no ragged in-kernel stores).
    z = out[:, :G, :].reshape(N, G, H, W)
    return jnp.concatenate([z, x_nchw], axis=1)


# ----------------------------------------------------------------------------
# Pure-JAX reference (exact semantics, highest-precision convs)
# ----------------------------------------------------------------------------
def bottleneck_d_reference(x, params):
    g1, b1, w1 = params["gamma1"], params["beta1"], params["w1"]
    g2, b2, w2 = params["gamma2"], params["beta2"], params["w2"]

    def bn(v, gamma, beta):
        m = v.mean(axis=(0, 2, 3), keepdims=True)
        s = v.var(axis=(0, 2, 3), keepdims=True)
        return (v - m) / jnp.sqrt(s + EPS) * gamma[None, :, None, None] \
            + beta[None, :, None, None]

    dn = ("NCHW", "OIHW", "NCHW")
    hi = lax.Precision.HIGHEST
    a1 = jnp.maximum(bn(x, g1, b1), 0.0)
    y = lax.conv_general_dilated(a1, w1, (1, 1), "VALID",
                                 dimension_numbers=dn, precision=hi)
    a2 = jnp.maximum(bn(y, g2, b2), 0.0)
    z = lax.conv_general_dilated(a2, w2, (1, 1), ((1, 1), (1, 1)),
                                 dimension_numbers=dn, precision=hi)
    return jnp.concatenate([z, x], axis=1)


# ----------------------------------------------------------------------------
def make_params(key, in_planes, growth_rate):
    c1 = 4 * growth_rate
    k1, k2, k3, k4, k5, k6 = jax.random.split(key, 6)
    return {
        "gamma1": 1.0 + 0.1 * jax.random.normal(k3, (in_planes,), jnp.float32),
        "beta1": 0.1 * jax.random.normal(k4, (in_planes,), jnp.float32),
        "w1": 0.1 * jax.random.normal(k1, (c1, in_planes, 1, 1), jnp.float32),
        "gamma2": 1.0 + 0.1 * jax.random.normal(k5, (c1,), jnp.float32),
        "beta2": 0.1 * jax.random.normal(k6, (c1,), jnp.float32),
        "w2": 0.1 * jax.random.normal(k2, (growth_rate, c1, 3, 3), jnp.float32),
    }


def _run_case(in_planes, growth_rate, N, H, W, seed):
    key = jax.random.PRNGKey(seed)
    kx, kp = jax.random.split(key)
    x = jax.random.normal(kx, (N, in_planes, H, W), jnp.float32)
    params = make_params(kp, in_planes, growth_rate)

    # max_tile_l=128 caps the lane tile so the toy size exercises the
    # multi-tile grid and the cross-tile (scratch-accumulated) BN2 statistics.
    fwd = jax.jit(functools.partial(bottleneck_d_forward, max_tile_l=128))
    out = jax.block_until_ready(fwd(x, params))
    ref = jax.block_until_ready(bottleneck_d_reference(x, params))

    assert out.shape == (N, growth_rate + in_planes, H, W), out.shape
    # The input-passthrough channels of the concat must be bit-exact.
    assert bool(jnp.array_equal(out[:, growth_rate:], x))
    # Conv channels: error floor is set by the bf16 MXU inputs + bf16 y store
    # (default compute_dtype); a real indexing/semantics bug would show up as
    # O(0.1 - 1) error, far above these thresholds.
    err = jnp.abs(out[:, :growth_rate] - ref[:, :growth_rate])
    max_err = float(jnp.max(err))
    mean_err = float(jnp.mean(err))
    assert max_err < 8e-2, f"max abs error too large: {max_err}"
    assert mean_err < 1.5e-2, f"mean abs error too large: {mean_err}"


if __name__ == "__main__":
    # Case 1: growth_rate not a multiple of 8 -> padded conv rows + lazy concat.
    _run_case(in_planes=8, growth_rate=4, N=2, H=16, W=16, seed=0)
    # Case 2: growth_rate multiple of 8 -> fully fused in-kernel channel concat.
    _run_case(in_planes=8, growth_rate=8, N=2, H=16, W=16, seed=1)
    print("KERNEL_OK")
</pallas_src>

<mosaic_0001>
module attributes {stable_mosaic.version = 11 : i64} {
  func.func @_channel_stats_kernel(%arg0: i32, %arg1: i32, %arg2: memref<1x8x128xf32, #tpu.memory_space<vmem>>, %arg3: memref<1x8x1xf32, #tpu.memory_space<vmem>>, %arg4: memref<1x8x1xf32, #tpu.memory_space<vmem>>, %arg5: memref<8x1xf32, #tpu.memory_space<vmem>>, %arg6: memref<8x1xf32, #tpu.memory_space<vmem>>) attributes {dimension_semantics = [#tpu.dimension_semantics<parallel>, #tpu.dimension_semantics<arbitrary>], iteration_bounds = array<i64: 2, 2>, scalar_prefetch = 0 : i64, scratch_operands = 2 : i64, tpu.core_type = #tpu.core_type<tc>, window_params = [{transform_indices = @transform_0, window_bounds = array<i64: 1, 8, 128>}, {transform_indices = @transform_1, window_bounds = array<i64: 1, 8, 1>}, {transform_indices = @transform_2, window_bounds = array<i64: 1, 8, 1>}]} {
    %c0_i32 = arith.constant 0 : i32
    %0 = arith.cmpi eq, %arg1, %c0_i32 : i32
    %1 = arith.extui %0 : i1 to i32
    %c0_i32_0 = arith.constant 0 : i32
    %2 = arith.cmpi ne, %1, %c0_i32_0 : i32
    scf.if %2 {
      %cst_13 = arith.constant 0.000000e+00 : f32
      %19 = vector.broadcast %cst_13 : f32 to vector<8x1xf32>
      %c0_14 = arith.constant 0 : index
      %c0_15 = arith.constant 0 : index
      %20 = vector.load %arg5[%c0_14, %c0_15] : memref<8x1xf32, #tpu.memory_space<vmem>>, vector<8x1xf32>
      tpu.vector_store %arg5[%c0_14, %c0_15], %19 {strides = array<i32>} : memref<8x1xf32, #tpu.memory_space<vmem>>, vector<8x1xf32>,
      %cst_16 = arith.constant 0.000000e+00 : f32
      %21 = vector.broadcast %cst_16 : f32 to vector<8x1xf32>
      %c0_17 = arith.constant 0 : index
      %c0_18 = arith.constant 0 : index
      %22 = vector.load %arg6[%c0_17, %c0_18] : memref<8x1xf32, #tpu.memory_space<vmem>>, vector<8x1xf32>
      tpu.vector_store %arg6[%c0_17, %c0_18], %21 {strides = array<i32>} : memref<8x1xf32, #tpu.memory_space<vmem>>, vector<8x1xf32>,
    } else {
    }
    %c0 = arith.constant 0 : index
    %c0_1 = arith.constant 0 : index
    %c0_2 = arith.constant 0 : index
    %3 = vector.load %arg2[%c0, %c0_1, %c0_2] : memref<1x8x128xf32, #tpu.memory_space<vmem>>, vector<1x8x128xf32>
    %4 = vector.shape_cast %3 : vector<1x8x128xf32> to vector<8x128xf32>
    %c0_3 = arith.constant 0 : index
    %c0_4 = arith.constant 0 : index
    %5 = vector.load %arg5[%c0_3, %c0_4] : memref<8x1xf32, #tpu.memory_space<vmem>>, vector<8x1xf32>
    %cst = arith.constant dense<0.000000e+00> : vector<8xf32>
    %6 = vector.multi_reduction <add>, %4, %cst [1] : vector<8x128xf32> to vector<8xf32>
    %7 = vector.shape_cast %6 : vector<8xf32> to vector<8x1xf32>
    %8 = arith.addf %5, %7 : vector<8x1xf32>
    %c0_5 = arith.constant 0 : index
    %c0_6 = arith.constant 0 : index
    %9 = vector.load %arg5[%c0_5, %c0_6] : memref<8x1xf32, #tpu.memory_space<vmem>>, vector<8x1xf32>
    tpu.vector_store %arg5[%c0_5, %c0_6], %8 {strides = array<i32>} : memref<8x1xf32, #tpu.memory_space<vmem>>, vector<8x1xf32>,
    %c0_7 = arith.constant 0 : index
    %c0_8 = arith.constant 0 : index
    %10 = vector.load %arg6[%c0_7, %c0_8] : memref<8x1xf32, #tpu.memory_space<vmem>>, vector<8x1xf32>
    %11 = arith.mulf %4, %4 : vector<8x128xf32>
    %cst_9 = arith.constant dense<0.000000e+00> : vector<8xf32>
    %12 = vector.multi_reduction <add>, %11, %cst_9 [1] : vector<8x128xf32> to vector<8xf32>
    %13 = vector.shape_cast %12 : vector<8xf32> to vector<8x1xf32>
    %14 = arith.addf %10, %13 : vector<8x1xf32>
    %c0_10 = arith.constant 0 : index
    %c0_11 = arith.constant 0 : index
    %15 = vector.load %arg6[%c0_10, %c0_11] : memref<8x1xf32, #tpu.memory_space<vmem>>, vector<8x1xf32>
    tpu.vector_store %arg6[%c0_10, %c0_11], %14 {strides = array<i32>} : memref<8x1xf32, #tpu.memory_space<vmem>>, vector<8x1xf32>,
    %c1_i32 = arith.constant 1 : i32
    %16 = arith.cmpi eq, %arg1, %c1_i32 : i32
    %17 = arith.extui %16 : i1 to i32
    %c0_i32_12 = arith.constant 0 : i32
    %18 = arith.cmpi ne, %17, %c0_i32_12 : i32
    scf.if %18 {
      %c0_13 = arith.constant 0 : index
      %c0_14 = arith.constant 0 : index
      %19 = vector.load %arg5[%c0_13, %c0_14] : memref<8x1xf32, #tpu.memory_space<vmem>>, vector<8x1xf32>
      %c0_15 = arith.constant 0 : index
      %c0_16 = arith.constant 0 : index
      %c0_17 = arith.constant 0 : index
      %20 = vector.load %arg3[%c0_15, %c0_16, %c0_17] : memref<1x8x1xf32, #tpu.memory_space<vmem>>, vector<1x8x1xf32>
      %21 = vector.shape_cast %20 : vector<1x8x1xf32> to vector<8x1xf32>
      %22 = vector.shape_cast %19 : vector<8x1xf32> to vector<1x8x1xf32>
      tpu.vector_store %arg3[%c0_15, %c0_16, %c0_17], %22 {strides = array<i32>} : memref<1x8x1xf32, #tpu.memory_space<vmem>>, vector<1x8x1xf32>,
      %c0_18 = arith.constant 0 : index
      %c0_19 = arith.constant 0 : index
      %23 = vector.load %arg6[%c0_18, %c0_19] : memref<8x1xf32, #tpu.memory_space<vmem>>, vector<8x1xf32>
      %c0_20 = arith.constant 0 : index
      %c0_21 = arith.constant 0 : index
      %c0_22 = arith.constant 0 : index
      %24 = vector.load %arg4[%c0_20, %c0_21, %c0_22] : memref<1x8x1xf32, #tpu.memory_space<vmem>>, vector<1x8x1xf32>
      %25 = vector.shape_cast %24 : vector<1x8x1xf32> to vector<8x1xf32>
      %26 = vector.shape_cast %23 : vector<8x1xf32> to vector<1x8x1xf32>
      tpu.vector_store %arg4[%c0_20, %c0_21, %c0_22], %26 {strides = array<i32>} : memref<1x8x1xf32, #tpu.memory_space<vmem>>, vector<1x8x1xf32>,
    } else {
    }
    return
  }
  func.func @transform_0(%arg0: i32, %arg1: i32) -> (i32, i32, i32) {
    %c0_i32 = arith.constant 0 : i32
    %c0_i32_0 = arith.constant 0 : i32
    return %arg0, %c0_i32, %arg1 : i32, i32, i32
  }
  func.func @transform_1(%arg0: i32, %arg1: i32) -> (i32, i32, i32) {
    %c0_i32 = arith.constant 0 : i32
    %c0_i32_0 = arith.constant 0 : i32
    %c0_i32_1 = arith.constant 0 : i32
    return %arg0, %c0_i32, %c0_i32_0 : i32, i32, i32
  }
  func.func @transform_2(%arg0: i32, %arg1: i32) -> (i32, i32, i32) {
    %c0_i32 = arith.constant 0 : i32
    %c0_i32_0 = arith.constant 0 : i32
    %c0_i32_1 = arith.constant 0 : i32
    return %arg0, %c0_i32, %c0_i32_0 : i32, i32, i32
  }
}

module attributes {stable_mosaic.version = 11 : i64} {
  func.func @_bn_relu_conv3x3_kernel(%arg0: i32, %arg1: memref<1x16x256xbf16, #tpu.memory_space<vmem>>, %arg2: memref<16x1xf32, #tpu.memory_space<vmem>>, %arg3: memref<16x1xf32, #tpu.memory_space<vmem>>, %arg4: memref<72x16xbf16, #tpu.memory_space<vmem>>, %arg5: memref<9x256xf32, #tpu.memory_space<vmem>>, %arg6: memref<1x8x256xf32, #tpu.memory_space<vmem>>) attributes {dimension_semantics = [#tpu.dimension_semantics<parallel>], iteration_bounds = array<i64: 2>, scalar_prefetch = 0 : i64, scratch_operands = 0 : i64, tpu.core_type = #tpu.core_type<tc>, window_params = [{transform_indices = @transform_0, window_bounds = array<i64: 1, 16, 256>}, {pipeline_mode = #tpu.pipeline_mode<synchronous>, transform_indices = @transform_1, window_bounds = array<i64: 16, 1>}, {pipeline_mode = #tpu.pipeline_mode<synchronous>, transform_indices = @transform_2, window_bounds = array<i64: 16, 1>}, {pipeline_mode = #tpu.pipeline_mode<synchronous>, transform_indices = @transform_3, window_bounds = array<i64: 72, 16>}, {pipeline_mode = #tpu.pipeline_mode<synchronous>, transform_indices = @transform_4, window_bounds = array<i64: 9, 256>}, {transform_indices = @transform_5, window_bounds = array<i64: 1, 8, 256>}]} {
    %c0 = arith.constant 0 : index
    %c0_0 = arith.constant 0 : index
    %c0_1 = arith.constant 0 : index
    %0 = vector.load %arg1[%c0, %c0_0, %c0_1] : memref<1x16x256xbf16, #tpu.memory_space<vmem>>, vector<1x16x256xbf16>
    %1 = vector.shape_cast %0 : vector<1x16x256xbf16> to vector<16x256xbf16>
    %c0_2 = arith.constant 0 : index
    %c0_3 = arith.constant 0 : index
    %2 = vector.load %arg2[%c0_2, %c0_3] : memref<16x1xf32, #tpu.memory_space<vmem>>, vector<16x1xf32>
    %3 = arith.extf %1 : vector<16x256xbf16> to vector<16x256xf32>
    %4 = vector.broadcast %2 : vector<16x1xf32> to vector<16x256xf32>
    %5 = arith.mulf %3, %4 : vector<16x256xf32>
    %c0_4 = arith.constant 0 : index
    %c0_5 = arith.constant 0 : index
    %6 = vector.load %arg3[%c0_4, %c0_5] : memref<16x1xf32, #tpu.memory_space<vmem>>, vector<16x1xf32>
    %7 = vector.broadcast %6 : vector<16x1xf32> to vector<16x256xf32>
    %8 = arith.addf %5, %7 : vector<16x256xf32>
    %cst = arith.constant 0.000000e+00 : f32
    %9 = vector.broadcast %cst : f32 to vector<16x256xf32>
    %10 = arith.maximumf %8, %9 : vector<16x256xf32>
    %c0_6 = arith.constant 0 : index
    %c0_7 = arith.constant 0 : index
    %11 = vector.load %arg4[%c0_6, %c0_7] : memref<72x16xbf16, #tpu.memory_space<vmem>>, vector<72x16xbf16>
    %12 = arith.truncf %10 : vector<16x256xf32> to vector<16x256xbf16>
    %cst_8 = arith.constant dense<0.000000e+00> : vector<72x256xf32>
    %13 = tpu.matmul %11, %12, %cst_8 {dimension_numbers = #tpu.dot_dimension_numbers<[1], [0], [0], [1], [0, 0, 1, 1], [], []>} : vector<72x16xbf16>, vector<16x256xbf16>, vector<72x256xf32> -> vector<72x256xf32>
    %c0_9 = arith.constant 0 : index
    %c0_10 = arith.constant 0 : index
    %14 = vector.load %arg5[%c0_9, %c0_10] : memref<9x256xf32, #tpu.memory_space<vmem>>, vector<9x256xf32>
    %15 = vector.extract_strided_slice %13 {offsets = [0, 0], sizes = [8, 256], strides = [1, 1]} : vector<72x256xf32> to vector<8x256xf32>
    %c17_i32 = arith.constant 17 : i32
    %16 = tpu.dynamic_rotate %15 by %c17_i32 dim 1 : vector<8x256xf32>, i32 -> vector<8x256xf32>
    %17 = vector.extract_strided_slice %14 {offsets = [0, 0], sizes = [1, 256], strides = [1, 1]} : vector<9x256xf32> to vector<1x256xf32>
    %18 = vector.broadcast %17 : vector<1x256xf32> to vector<8x256xf32>
    %19 = arith.mulf %16, %18 : vector<8x256xf32>
    %20 = vector.extract_strided_slice %13 {offsets = [8, 0], sizes = [8, 256], strides = [1, 1]} : vector<72x256xf32> to vector<8x256xf32>
    %c16_i32 = arith.constant 16 : i32
    %21 = tpu.dynamic_rotate %20 by %c16_i32 dim 1 : vector<8x256xf32>, i32 -> vector<8x256xf32>
    %22 = vector.extract_strided_slice %14 {offsets = [1, 0], sizes = [1, 256], strides = [1, 1]} : vector<9x256xf32> to vector<1x256xf32>
    %23 = vector.broadcast %22 : vector<1x256xf32> to vector<8x256xf32>
    %24 = arith.mulf %21, %23 : vector<8x256xf32>
    %25 = arith.addf %19, %24 : vector<8x256xf32>
    %26 = vector.extract_strided_slice %13 {offsets = [16, 0], sizes = [8, 256], strides = [1, 1]} : vector<72x256xf32> to vector<8x256xf32>
    %c15_i32 = arith.constant 15 : i32
    %27 = tpu.dynamic_rotate %26 by %c15_i32 dim 1 : vector<8x256xf32>, i32 -> vector<8x256xf32>
    %28 = vector.extract_strided_slice %14 {offsets = [2, 0], sizes = [1, 256], strides = [1, 1]} : vector<9x256xf32> to vector<1x256xf32>
    %29 = vector.broadcast %28 : vector<1x256xf32> to vector<8x256xf32>
    %30 = arith.mulf %27, %29 : vector<8x256xf32>
    %31 = arith.addf %25, %30 : vector<8x256xf32>
    %32 = vector.extract_strided_slice %13 {offsets = [24, 0], sizes = [8, 256], strides = [1, 1]} : vector<72x256xf32> to vector<8x256xf32>
    %c1_i32 = arith.constant 1 : i32
    %33 = tpu.dynamic_rotate %32 by %c1_i32 dim 1 : vector<8x256xf32>, i32 -> vector<8x256xf32>
    %34 = vector.extract_strided_slice %14 {offsets = [3, 0], sizes = [1, 256], strides = [1, 1]} : vector<9x256xf32> to vector<1x256xf32>
    %35 = vector.broadcast %34 : vector<1x256xf32> to vector<8x256xf32>
    %36 = arith.mulf %33, %35 : vector<8x256xf32>
    %37 = arith.addf %31, %36 : vector<8x256xf32>
    %38 = vector.extract_strided_slice %13 {offsets = [32, 0], sizes = [8, 256], strides = [1, 1]} : vector<72x256xf32> to vector<8x256xf32>
    %39 = vector.extract_strided_slice %14 {offsets = [4, 0], sizes = [1, 256], strides = [1, 1]} : vector<9x256xf32> to vector<1x256xf32>
    %40 = vector.broadcast %39 : vector<1x256xf32> to vector<8x256xf32>
    %41 = arith.mulf %38, %40 : vector<8x256xf32>
    %42 = arith.addf %37, %41 : vector<8x256xf32>
    %43 = vector.extract_strided_slice %13 {offsets = [40, 0], sizes = [8, 256], strides = [1, 1]} : vector<72x256xf32> to vector<8x256xf32>
    %c255_i32 = arith.constant 255 : i32
    %44 = tpu.dynamic_rotate %43 by %c255_i32 dim 1 : vector<8x256xf32>, i32 -> vector<8x256xf32>
    %45 = vector.extract_strided_slice %14 {offsets = [5, 0], sizes = [1, 256], strides = [1, 1]} : vector<9x256xf32> to vector<1x256xf32>
    %46 = vector.broadcast %45 : vector<1x256xf32> to vector<8x256xf32>
    %47 = arith.mulf %44, %46 : vector<8x256xf32>
    %48 = arith.addf %42, %47 : vector<8x256xf32>
    %49 = vector.extract_strided_slice %13 {offsets = [48, 0], sizes = [8, 256], strides = [1, 1]} : vector<72x256xf32> to vector<8x256xf32>
    %c241_i32 = arith.constant 241 : i32
    %50 = tpu.dynamic_rotate %49 by %c241_i32 dim 1 : vector<8x256xf32>, i32 -> vector<8x256xf32>
    %51 = vector.extract_strided_slice %14 {offsets = [6, 0], sizes = [1, 256], strides = [1, 1]} : vector<9x256xf32> to vector<1x256xf32>
    %52 = vector.broadcast %51 : vector<1x256xf32> to vector<8x256xf32>
    %53 = arith.mulf %50, %52 : vector<8x256xf32>
    %54 = arith.addf %48, %53 : vector<8x256xf32>
    %55 = vector.extract_strided_slice %13 {offsets = [56, 0], sizes = [8, 256], strides = [1, 1]} : vector<72x256xf32> to vector<8x256xf32>
    %c240_i32 = arith.constant 240 : i32
    %56 = tpu.dynamic_rotate %55 by %c240_i32 dim 1 : vector<8x256xf32>, i32 -> vector<8x256xf32>
    %57 = vector.extract_strided_slice %14 {offsets = [7, 0], sizes = [1, 256], strides = [1, 1]} : vector<9x256xf32> to vector<1x256xf32>
    %58 = vector.broadcast %57 : vector<1x256xf32> to vector<8x256xf32>
    %59 = arith.mulf %56, %58 : vector<8x256xf32>
    %60 = arith.addf %54, %59 : vector<8x256xf32>
    %61 = vector.extract_strided_slice %13 {offsets = [64, 0], sizes = [8, 256], strides = [1, 1]} : vector<72x256xf32> to vector<8x256xf32>
    %c239_i32 = arith.constant 239 : i32
    %62 = tpu.dynamic_rotate %61 by %c239_i32 dim 1 : vector<8x256xf32>, i32 -> vector<8x256xf32>
    %63 = vector.extract_strided_slice %14 {offsets = [8, 0], sizes = [1, 256], strides = [1, 1]} : vector<9x256xf32> to vector<1x256xf32>
    %64 = vector.broadcast %63 : vector<1x256xf32> to vector<8x256xf32>
    %65 = arith.mulf %62, %64 : vector<8x256xf32>
    %66 = arith.addf %60, %65 : vector<8x256xf32>
    %c0_11 = arith.constant 0 : index
    %c0_12 = arith.constant 0 : index
    %c0_13 = arith.constant 0 : index
    %67 = vector.load %arg6[%c0_11, %c0_12, %c0_13] : memref<1x8x256xf32, #tpu.memory_space<vmem>>, vector<1x8x256xf32>
    %68 = vector.shape_cast %67 : vector<1x8x256xf32> to vector<8x256xf32>
    %69 = vector.shape_cast %66 : vector<8x256xf32> to vector<1x8x256xf32>
    tpu.vector_store %arg6[%c0_11, %c0_12, %c0_13], %69 {strides = array<i32>} : memref<1x8x256xf32, #tpu.memory_space<vmem>>, vector<1x8x256xf32>,
    return
  }
  func.func @transform_0(%arg0: i32) -> (i32, i32, i32) {
    %c0_i32 = arith.constant 0 : i32
    %c0_i32_0 = arith.constant 0 : i32
    %c0_i32_1 = arith.constant 0 : i32
    return %arg0, %c0_i32, %c0_i32_0 : i32, i32, i32
  }
  func.func @transform_1(%arg0: i32) -> (i32, i32) {
    %c0_i32 = arith.constant 0 : i32
    %c0_i32_0 = arith.constant 0 : i32
    %c0_i32_1 = arith.constant 0 : i32
    return %c0_i32, %c0_i32_0 : i32, i32
  }
  func.func @transform_2(%arg0: i32) -> (i32, i32) {
    %c0_i32 = arith.constant 0 : i32
    %c0_i32_0 = arith.constant 0 : i32
    %c0_i32_1 = arith.constant 0 : i32
    return %c0_i32, %c0_i32_0 : i32, i32
  }
  func.func @transform_3(%arg0: i32) -> (i32, i32) {
    %c0_i32 = arith.constant 0 : i32
    %c0_i32_0 = arith.constant 0 : i32
    %c0_i32_1 = arith.constant 0 : i32
    return %c0_i32, %c0_i32_0 : i32, i32
  }
  func.func @transform_4(%arg0: i32) -> (i32, i32) {
    %c0_i32 = arith.constant 0 : i32
    %c0_i32_0 = arith.constant 0 : i32
    %c0_i32_1 = arith.constant 0 : i32
    return %c0_i32, %c0_i32_0 : i32, i32
  }
  func.func @transform_5(%arg0: i32) -> (i32, i32, i32) {
    %c0_i32 = arith.constant 0 : i32
    %c0_i32_0 = arith.constant 0 : i32
    %c0_i32_1 = arith.constant 0 : i32
    return %arg0, %c0_i32, %c0_i32_0 : i32, i32, i32
  }
}

module attributes {stable_mosaic.version = 11 : i64} {
  func.func @_bn_relu_conv1x1_kernel(%arg0: i32, %arg1: i32, %arg2: memref<1x8x128xf32, #tpu.memory_space<vmem>>, %arg3: memref<8x1xf32, #tpu.memory_space<vmem>>, %arg4: memref<8x1xf32, #tpu.memory_space<vmem>>, %arg5: memref<16x8xbf16, #tpu.memory_space<vmem>>, %arg6: memref<1x16x128xbf16, #tpu.memory_space<vmem>>, %arg7: memref<1x16x1xf32, #tpu.memory_space<vmem>>, %arg8: memref<1x16x1xf32, #tpu.memory_space<vmem>>, %arg9: memref<16x1xf32, #tpu.memory_space<vmem>>, %arg10: memref<16x1xf32, #tpu.memory_space<vmem>>) attributes {dimension_semantics = [#tpu.dimension_semantics<parallel>, #tpu.dimension_semantics<arbitrary>], iteration_bounds = array<i64: 2, 2>, scalar_prefetch = 0 : i64, scratch_operands = 2 : i64, tpu.core_type = #tpu.core_type<tc>, window_params = [{transform_indices = @transform_0, window_bounds = array<i64: 1, 8, 128>}, {pipeline_mode = #tpu.pipeline_mode<synchronous>, transform_indices = @transform_1, window_bounds = array<i64: 8, 1>}, {pipeline_mode = #tpu.pipeline_mode<synchronous>, transform_indices = @transform_2, window_bounds = array<i64: 8, 1>}, {pipeline_mode = #tpu.pipeline_mode<synchronous>, transform_indices = @transform_3, window_bounds = array<i64: 16, 8>}, {transform_indices = @transform_4, window_bounds = array<i64: 1, 16, 128>}, {transform_indices = @transform_5, window_bounds = array<i64: 1, 16, 1>}, {transform_indices = @transform_6, window_bounds = array<i64: 1, 16, 1>}]} {
    %c0_i32 = arith.constant 0 : i32
    %0 = arith.cmpi eq, %arg1, %c0_i32 : i32
    %1 = arith.extui %0 : i1 to i32
    %c0_i32_0 = arith.constant 0 : i32
    %2 = arith.cmpi ne, %1, %c0_i32_0 : i32
    scf.if %2 {
      %cst_24 = arith.constant 0.000000e+00 : f32
      %34 = vector.broadcast %cst_24 : f32 to vector<16x1xf32>
      %c0_25 = arith.constant 0 : index
      %c0_26 = arith.constant 0 : index
      %35 = vector.load %arg9[%c0_25, %c0_26] : memref<16x1xf32, #tpu.memory_space<vmem>>, vector<16x1xf32>
      tpu.vector_store %arg9[%c0_25, %c0_26], %34 {strides = array<i32>} : memref<16x1xf32, #tpu.memory_space<vmem>>, vector<16x1xf32>,
      %cst_27 = arith.constant 0.000000e+00 : f32
      %36 = vector.broadcast %cst_27 : f32 to vector<16x1xf32>
      %c0_28 = arith.constant 0 : index
      %c0_29 = arith.constant 0 : index
      %37 = vector.load %arg10[%c0_28, %c0_29] : memref<16x1xf32, #tpu.memory_space<vmem>>, vector<16x1xf32>
      tpu.vector_store %arg10[%c0_28, %c0_29], %36 {strides = array<i32>} : memref<16x1xf32, #tpu.memory_space<vmem>>, vector<16x1xf32>,
    } else {
    }
    %c0 = arith.constant 0 : index
    %c0_1 = arith.constant 0 : index
    %c0_2 = arith.constant 0 : index
    %3 = vector.load %arg2[%c0, %c0_1, %c0_2] : memref<1x8x128xf32, #tpu.memory_space<vmem>>, vector<1x8x128xf32>
    %4 = vector.shape_cast %3 : vector<1x8x128xf32> to vector<8x128xf32>
    %c0_3 = arith.constant 0 : index
    %c0_4 = arith.constant 0 : index
    %5 = vector.load %arg3[%c0_3, %c0_4] : memref<8x1xf32, #tpu.memory_space<vmem>>, vector<8x1xf32>
    %6 = vector.broadcast %5 : vector<8x1xf32> to vector<8x128xf32>
    %7 = arith.mulf %4, %6 : vector<8x128xf32>
    %c0_5 = arith.constant 0 : index
    %c0_6 = arith.constant 0 : index
    %8 = vector.load %arg4[%c0_5, %c0_6] : memref<8x1xf32, #tpu.memory_space<vmem>>, vector<8x1xf32>
    %9 = vector.broadcast %8 : vector<8x1xf32> to vector<8x128xf32>
    %10 = arith.addf %7, %9 : vector<8x128xf32>
    %cst = arith.constant 0.000000e+00 : f32
    %11 = vector.broadcast %cst : f32 to vector<8x128xf32>
    %12 = arith.maximumf %10, %11 : vector<8x128xf32>
    %c0_7 = arith.constant 0 : index
    %c0_8 = arith.constant 0 : index
    %13 = vector.load %arg5[%c0_7, %c0_8] : memref<16x8xbf16, #tpu.memory_space<vmem>>, vector<16x8xbf16>
    %14 = arith.truncf %12 : vector<8x128xf32> to vector<8x128xbf16>
    %cst_9 = arith.constant dense<0.000000e+00> : vector<16x128xf32>
    %15 = tpu.matmul %13, %14, %cst_9 {dimension_numbers = #tpu.dot_dimension_numbers<[1], [0], [0], [1], [0, 0, 1, 1], [], []>} : vector<16x8xbf16>, vector<8x128xbf16>, vector<16x128xf32> -> vector<16x128xf32>
    %16 = arith.truncf %15 : vector<16x128xf32> to vector<16x128xbf16>
    %c0_10 = arith.constant 0 : index
    %c0_11 = arith.constant 0 : index
    %c0_12 = arith.constant 0 : index
    %17 = vector.load %arg6[%c0_10, %c0_11, %c0_12] : memref<1x16x128xbf16, #tpu.memory_space<vmem>>, vector<1x16x128xbf16>
    %18 = vector.shape_cast %17 : vector<1x16x128xbf16> to vector<16x128xbf16>
    %19 = vector.shape_cast %16 : vector<16x128xbf16> to vector<1x16x128xbf16>
    tpu.vector_store %arg6[%c0_10, %c0_11, %c0_12], %19 {strides = array<i32>} : memref<1x16x128xbf16, #tpu.memory_space<vmem>>, vector<1x16x128xbf16>,
    %c0_13 = arith.constant 0 : index
    %c0_14 = arith.constant 0 : index
    %20 = vector.load %arg9[%c0_13, %c0_14] : memref<16x1xf32, #tpu.memory_space<vmem>>, vector<16x1xf32>
    %cst_15 = arith.constant dense<0.000000e+00> : vector<16xf32>
    %21 = vector.multi_reduction <add>, %15, %cst_15 [1] : vector<16x128xf32> to vector<16xf32>
    %22 = vector.shape_cast %21 : vector<16xf32> to vector<16x1xf32>
    %23 = arith.addf %20, %22 : vector<16x1xf32>
    %c0_16 = arith.constant 0 : index
    %c0_17 = arith.constant 0 : index
    %24 = vector.load %arg9[%c0_16, %c0_17] : memref<16x1xf32, #tpu.memory_space<vmem>>, vector<16x1xf32>
    tpu.vector_store %arg9[%c0_16, %c0_17], %23 {strides = array<i32>} : memref<16x1xf32, #tpu.memory_space<vmem>>, vector<16x1xf32>,
    %c0_18 = arith.constant 0 : index
    %c0_19 = arith.constant 0 : index
    %25 = vector.load %arg10[%c0_18, %c0_19] : memref<16x1xf32, #tpu.memory_space<vmem>>, vector<16x1xf32>
    %26 = arith.mulf %15, %15 : vector<16x128xf32>
    %cst_20 = arith.constant dense<0.000000e+00> : vector<16xf32>
    %27 = vector.multi_reduction <add>, %26, %cst_20 [1] : vector<16x128xf32> to vector<16xf32>
    %28 = vector.shape_cast %27 : vector<16xf32> to vector<16x1xf32>
    %29 = arith.addf %25, %28 : vector<16x1xf32>
    %c0_21 = arith.constant 0 : index
    %c0_22 = arith.constant 0 : index
    %30 = vector.load %arg10[%c0_21, %c0_22] : memref<16x1xf32, #tpu.memory_space<vmem>>, vector<16x1xf32>
    tpu.vector_store %arg10[%c0_21, %c0_22], %29 {strides = array<i32>} : memref<16x1xf32, #tpu.memory_space<vmem>>, vector<16x1xf32>,
    %c1_i32 = arith.constant 1 : i32
    %31 = arith.cmpi eq, %arg1, %c1_i32 : i32
    %32 = arith.extui %31 : i1 to i32
    %c0_i32_23 = arith.constant 0 : i32
    %33 = arith.cmpi ne, %32, %c0_i32_23 : i32
    scf.if %33 {
      %c0_24 = arith.constant 0 : index
      %c0_25 = arith.constant 0 : index
      %34 = vector.load %arg9[%c0_24, %c0_25] : memref<16x1xf32, #tpu.memory_space<vmem>>, vector<16x1xf32>
      %c0_26 = arith.constant 0 : index
      %c0_27 = arith.constant 0 : index
      %c0_28 = arith.constant 0 : index
      %35 = vector.load %arg7[%c0_26, %c0_27, %c0_28] : memref<1x16x1xf32, #tpu.memory_space<vmem>>, vector<1x16x1xf32>
      %36 = vector.shape_cast %35 : vector<1x16x1xf32> to vector<16x1xf32>
      %37 = vector.shape_cast %34 : vector<16x1xf32> to vector<1x16x1xf32>
      tpu.vector_store %arg7[%c0_26, %c0_27, %c0_28], %37 {strides = array<i32>} : memref<1x16x1xf32, #tpu.memory_space<vmem>>, vector<1x16x1xf32>,
      %c0_29 = arith.constant 0 : index
      %c0_30 = arith.constant 0 : index
      %38 = vector.load %arg10[%c0_29, %c0_30] : memref<16x1xf32, #tpu.memory_space<vmem>>, vector<16x1xf32>
      %c0_31 = arith.constant 0 : index
      %c0_32 = arith.constant 0 : index
      %c0_33 = arith.constant 0 : index
      %39 = vector.load %arg8[%c0_31, %c0_32, %c0_33] : memref<1x16x1xf32, #tpu.memory_space<vmem>>, vector<1x16x1xf32>
      %40 = vector.shape_cast %39 : vector<1x16x1xf32> to vector<16x1xf32>
      %41 = vector.shape_cast %38 : vector<16x1xf32> to vector<1x16x1xf32>
      tpu.vector_store %arg8[%c0_31, %c0_32, %c0_33], %41 {strides = array<i32>} : memref<1x16x1xf32, #tpu.memory_space<vmem>>, vector<1x16x1xf32>,
    } else {
    }
    return
  }
  func.func @transform_0(%arg0: i32, %arg1: i32) -> (i32, i32, i32) {
    %c0_i32 = arith.constant 0 : i32
    %c0_i32_0 = arith.constant 0 : i32
    return %arg0, %c0_i32, %arg1 : i32, i32, i32
  }
  func.func @transform_1(%arg0: i32, %arg1: i32) -> (i32, i32) {
    %c0_i32 = arith.constant 0 : i32
    %c0_i32_0 = arith.constant 0 : i32
    %c0_i32_1 = arith.constant 0 : i32
    return %c0_i32, %c0_i32_0 : i32, i32
  }
  func.func @transform_2(%arg0: i32, %arg1: i32) -> (i32, i32) {
    %c0_i32 = arith.constant 0 : i32
    %c0_i32_0 = arith.constant 0 : i32
    %c0_i32_1 = arith.constant 0 : i32
    return %c0_i32, %c0_i32_0 : i32, i32
  }
  func.func @transform_3(%arg0: i32, %arg1: i32) -> (i32, i32) {
    %c0_i32 = arith.constant 0 : i32
    %c0_i32_0 = arith.constant 0 : i32
    %c0_i32_1 = arith.constant 0 : i32
    return %c0_i32, %c0_i32_0 : i32, i32
  }
  func.func @transform_4(%arg0: i32, %arg1: i32) -> (i32, i32, i32) {
    %c0_i32 = arith.constant 0 : i32
    %c0_i32_0 = arith.constant 0 : i32
    return %arg0, %c0_i32, %arg1 : i32, i32, i32
  }
  func.func @transform_5(%arg0: i32, %arg1: i32) -> (i32, i32, i32) {
    %c0_i32 = arith.constant 0 : i32
    %c0_i32_0 = arith.constant 0 : i32
    %c0_i32_1 = arith.constant 0 : i32
    return %arg0, %c0_i32, %c0_i32_0 : i32, i32, i32
  }
  func.func @transform_6(%arg0: i32, %arg1: i32) -> (i32, i32, i32) {
    %c0_i32 = arith.constant 0 : i32
    %c0_i32_0 = arith.constant 0 : i32
    %c0_i32_1 = arith.constant 0 : i32
    return %arg0, %c0_i32, %c0_i32_0 : i32, i32, i32
  }
}

</mosaic_0001>

<llo_original>
// kernel: bottleneck_d_forward.3
$region0: #{bottleneck_d_forward.3}
  #allocation0 [shape = 'u32[]', space=smem, size = 0x4, offset = 0x4, fixed_abs, tag = 'smem constant byte address 0x4 - core index']
  #allocation1 [shape = 'u32[72,128]{1,0:T(1,128)}', space=vmem, size = 0x9000, scoped, tag = 'internal scratch']
  #allocation2 [shape = 'f32[8,1]{1,0:T(8,128)}', space=vmem, size = 0x1000, scoped, tag = 'scratch operand']
  #allocation3 [shape = 'f32[8,1]{1,0:T(8,128)}', space=vmem, size = 0x1000, scoped, tag = 'scratch operand']
  %s0 = inlined_call_operand.vmem [shape: f32[2,8,256], index: 0, kind: input, shape index: {}]
  %s1 = inlined_call_operand.vmem [shape: f32[2,8,1], index: 1, kind: output, shape index: {0}]
  %s2 = inlined_call_operand.vmem [shape: f32[2,8,1], index: 2, kind: output, shape index: {1}]
  %3 = xla_tuple %s1, %s2
  %s4 = sld [smem:[#allocation0]]
  $region53: #{bottleneck_d_forward.3} parent=0
    _
  %s6 = ssub.s32 1, %s4
  %s7 = scalar_select 0, %s6, %s4
  loop: start=0, step=1, limit=6
  $region2: #{bottleneck_d_forward.3} parent=0 // loop_pre_header
    _
  $region3: #{bottleneck_d_forward.3} parent=0 // loop_header
    %s9 = sphi 0, %s13
    %p10 = scmp.ge.s32.totalorder %s9, 6
    %s16 = sphi 0, %s28
    %s17 = sphi 0, %s24
    %s18 = sphi 0, %s16
    %s19 = sphi 0, %s17
    %s20 = sphi 0, %s18
    %s21 = sphi 0, %s19
    %s33 = sphi 0, %s35
    %s36 = sphi 0, %s33
    %s37 = sphi 0, %s36
    %s53 = sphi 0, %s37
    %s59 = sphi 0, %s61
    %s62 = sphi 0, %s59
    %s63 = sphi 0, %s62
    %s79 = sphi 0, %s63
    %s85 = sphi 0, %s87
    %s88 = sphi 0, %s85
    %s89 = sphi 0, %s88
    %s105 = sphi 0, %s89
  $region4: #{bottleneck_d_forward.3} parent=0 // loop_header_branch
    %12 = sbr.rel (%p10) target = $region8
  $region5: #{bottleneck_d_forward.3} parent=0 // loop_body
    %s14 = ssub.s32 %s9, 1
    %s15 = ssub.s32 %s9, 2
    %s22 = sadd.s32 1, %s17
    %p23 = scmp.ge.s32.totalorder %s22, 2
    %s24 = scalar_select %p23, 0, %s22
    %s25 = sadd.s32 1, %s16
    %s26 = scalar_select %p23, %s25, %s16
    %p27 = scmp.ge.s32.totalorder %s26, 2
    %s28 = scalar_select %p27, 0, %s26
    %s29 = ssub.s32 %s16, %s28
    %s30 = ssub.s32 %s17, %s24
    %s31 = sor.u32 %s29, %s30
    %p32 = scmp.eq.s32.totalorder %s31, 0
    %s34 = sadd.s32 %s33, 1
    %s35 = scalar_select %p32, %s33, %s34
    %p38 = pneg %p32
    %p39 = scmp.eq.s32.totalorder %s9, 3
    %p40 = por %p38, %p39
    %p41 = scmp.ne.s32.totalorder %s33, %s36
    %p42 = scmp.eq.s32.totalorder %s9, 0
    %p43 = por %p41, %p42
    %p44 = scmp.ne.s32.totalorder %s33, %s36
    %p45 = scmp.eq.s32.totalorder %s14, 3
    %p46 = por %p44, %p45
    %p47 = scmp.ne.s32.totalorder %s36, %s37
    %p48 = scmp.eq.s32.totalorder %s14, 0
    %p49 = por %p47, %p48
    %p50 = scmp.ne.s32.totalorder %s36, %s37
    %p51 = scmp.eq.s32.totalorder %s15, 3
    %p52 = por %p50, %p51
    %p54 = scmp.ne.s32.totalorder %s37, %s53
    %p55 = scmp.eq.s32.totalorder %s15, 0
    %p56 = por %p54, %p55
    %s57 = ssub.s32 %s16, %s28
    %p58 = scmp.eq.s32.totalorder %s57, 0
    %s60 = sadd.s32 %s59, 1
    %s61 = scalar_select %p58, %s59, %s60
    %p64 = pneg %p58
    %p65 = scmp.eq.s32.totalorder %s9, 3
    %p66 = por %p64, %p65
    %p67 = scmp.ne.s32.totalorder %s59, %s62
    %p68 = scmp.eq.s32.totalorder %s9, 0
    %p69 = por %p67, %p68
    %p70 = scmp.ne.s32.totalorder %s59, %s62
    %p71 = scmp.eq.s32.totalorder %s14, 3
    %p72 = por %p70, %p71
    %p73 = scmp.ne.s32.totalorder %s62, %s63
    %p74 = scmp.eq.s32.totalorder %s14, 0
    %p75 = por %p73, %p74
    %p76 = scmp.ne.s32.totalorder %s62, %s63
    %p77 = scmp.eq.s32.totalorder %s15, 3
    %p78 = por %p76, %p77
    %p80 = scmp.ne.s32.totalorder %s63, %s79
    %p81 = scmp.eq.s32.totalorder %s15, 0
    %p82 = por %p80, %p81
    %s83 = ssub.s32 %s16, %s28
    %p84 = scmp.eq.s32.totalorder %s83, 0
    %s86 = sadd.s32 %s85, 1
    %s87 = scalar_select %p84, %s85, %s86
    %p90 = pneg %p84
    %p91 = scmp.eq.s32.totalorder %s9, 3
    %p92 = por %p90, %p91
    %p93 = scmp.ne.s32.totalorder %s85, %s88
    %p94 = scmp.eq.s32.totalorder %s9, 0
    %p95 = por %p93, %p94
    %p96 = scmp.ne.s32.totalorder %s85, %s88
    %p97 = scmp.eq.s32.totalorder %s14, 3
    %p98 = por %p96, %p97
    %p99 = scmp.ne.s32.totalorder %s88, %s89
    %p100 = scmp.eq.s32.totalorder %s14, 0
    %p101 = por %p99, %p100
    %p102 = scmp.ne.s32.totalorder %s88, %s89
    %p103 = scmp.eq.s32.totalorder %s15, 3
    %p104 = por %p102, %p103
    %p106 = scmp.ne.s32.totalorder %s89, %s105
    %p107 = scmp.eq.s32.totalorder %s15, 0
    %p108 = por %p106, %p107
    %p109 = scmp.le.s32.totalorder 1, %s9
    %p110 = scmp.lt.s32.totalorder %s9, 5
    %p111 = pnand %p109, %p110
    %p112 = pneg %p111
    // Predicated region
    $region9: #{bottleneck_d_forward.3} parent=5 // pred_check
      _
    $region10: #{bottleneck_d_forward.3} parent=5 // pred_check_branch
      %114 = sbr.rel (%p111) target = $region12
    $region11: #{bottleneck_d_forward.3} parent=5 // pred_region
      %s115 = ssub.s32 %s9, 1
    $region12: #{bottleneck_d_forward.3} parent=5 // pred_fallthru
      _
    %p116 = scmp.lt.s32.totalorder %s9, 4
    // Predicated region
    $region13: #{bottleneck_d_forward.3} parent=5 // pred_check
      %p117 = pneg %p116
    $region14: #{bottleneck_d_forward.3} parent=5 // pred_check_branch
      %119 = sbr.rel (%p117) target = $region16
    $region15: #{bottleneck_d_forward.3} parent=5 // pred_region
      // Predicated region
      $region17: #{bottleneck_d_forward.3} parent=15 // pred_check
        %p120 = pneg %p43
      $region18: #{bottleneck_d_forward.3} parent=15 // pred_check_branch
        %122 = sbr.rel (%p120) target = $region20
      $region19: #{bottleneck_d_forward.3} parent=15 // pred_region
        %p123 = scmp.lt.s32.totalorder %s16, 1
        %s124 = scalar_select %p123, %s16, 1
        %p125 = scmp.lt.s32.totalorder %s17, 1
        %s126 = scalar_select %p125, %s17, 1
        %s127 = smul.addr %s124, 2
        %s128 = sadd.s32 %s126, %s127
        %s129 = smul.addr %s128, 8
        %s130 = scalar_lea.vmem %s0, %s129
      $region20: #{bottleneck_d_forward.3} parent=15 // pred_fallthru
        _
    $region16: #{bottleneck_d_forward.3} parent=5 // pred_fallthru
      _
    %p131 = scmp.le.s32.totalorder 1, %s9
    %p132 = scmp.lt.s32.totalorder %s9, 5
    %p133 = pnand %p131, %p132
    %p134 = pneg %p133
    // Predicated region
    $region21: #{bottleneck_d_forward.3} parent=5 // pred_check
      _
    $region22: #{bottleneck_d_forward.3} parent=5 // pred_check_branch
      %136 = sbr.rel (%p133) target = $region24
    $region23: #{bottleneck_d_forward.3} parent=5 // pred_region
      %s137 = ssub.s32 %s9, 1
      %p138 = scmp.lt.s32.totalorder %s18, 1
      %s139 = scalar_select %p138, %s18, 1
      %p140 = scmp.lt.s32.totalorder %s19, 1
      %s141 = scalar_select %p140, %s19, 1
      %s142 = smul.addr %s139, 2
      %s143 = sadd.s32 %s141, %s142
      %s144 = smul.addr %s143, 8
      %s145 = scalar_lea.vmem %s0, %s144
      %p146 = pneg %p49
      %p147 = pneg %p46
      %p148 = pneg %p75
      %p149 = pneg %p72
      %p150 = scmp.lt.s32.totalorder %s18, 1
      %s151 = scalar_select %p150, %s18, 1
      %s152 = smul.addr %s151, 8
      %s153 = scalar_lea.vmem %s1, %s152
      %p154 = pneg %p101
      %p155 = pneg %p98
      %p156 = scmp.lt.s32.totalorder %s18, 1
      %s157 = scalar_select %p156, %s18, 1
      %s158 = smul.addr %s157, 8
      %s159 = scalar_lea.vmem %s2, %s158
      %p160 = scmp.lt.s32.totalorder %s18, 1
      %s161 = scalar_select %p160, %s18, 1
      %p162 = scmp.lt.s32.totalorder %s19, 1
      %s163 = scalar_select %p162, %s19, 1
      %s164 = smul.addr %s161, 2
      %s165 = sadd.s32 %s163, %s164
      %s166 = smul.addr %s165, 8
      %s167 = scalar_lea.vmem %s0, %s166
      %p168 = scmp.lt.s32.totalorder %s18, 1
      %s169 = scalar_select %p168, %s18, 1
      %s170 = smul.addr %s169, 8
      %s171 = scalar_lea.vmem %s1, %s170
      %p172 = scmp.lt.s32.totalorder %s18, 1
      %s173 = scalar_select %p172, %s18, 1
      %s174 = smul.addr %s173, 8
      %s175 = scalar_lea.vmem %s2, %s174
      %p176 = scmp.eq.s32.totalorder %s19, 0
      // Predicated region
      $region25: #{bottleneck_d_forward.3} parent=23 // pred_check
        %p177 = pneg %p176
      $region26: #{bottleneck_d_forward.3} parent=23 // pred_check_branch
        %179 = sbr.rel (%p177) target = $region28
      $region27: #{bottleneck_d_forward.3} parent=23 // pred_region
        %vm180 = vcmask 7168
        %181 = vst.msk [vmem:[#allocation2] sm:$0xff] %vm180, 0.0
        %182 = vst.msk [vmem:[#allocation3] sm:$0xff] %vm180, 0.0
      $region28: #{bottleneck_d_forward.3} parent=23 // pred_fallthru
        _
      %v183 = vld [vmem:[%s167] sm:$0xff]
      %v184 = vld [vmem:[#allocation2] sm:$0xff]
      %185 = vadd.xlane.f32.xlu0 %v183
      %v186 = vpop.xlane.xlu0 %185
      %v187 = vadd.f32 %v184, %v186
      %vm188 = vcmask 7168
      %189 = vst.msk [vmem:[#allocation2] sm:$0xff] %vm188, %v187
      %v190 = vld [vmem:[#allocation3] sm:$0xff]
      %v191 = vmul.f32 %v183, %v183
      %192 = vadd.xlane.f32.xlu0 %v191
      %v193 = vpop.xlane.xlu0 %192
      %v194 = vadd.f32 %v190, %v193
      %195 = vst.msk [vmem:[#allocation3] sm:$0xff] %vm188, %v194
      %p196 = scmp.eq.s32.totalorder %s19, 1
      // Predicated region
      $region29: #{bottleneck_d_forward.3} parent=23 // pred_check
        %p197 = pneg %p196
      $region30: #{bottleneck_d_forward.3} parent=23 // pred_check_branch
        %199 = sbr.rel (%p197) target = $region32
      $region31: #{bottleneck_d_forward.3} parent=23 // pred_region
        %v200 = vld [vmem:[#allocation2] sm:$0xff]
        %201 = vst.msk [vmem:[%s171] sm:$0xff] %vm188, %v200
        %v202 = vld [vmem:[#allocation3] sm:$0xff]
        %203 = vst.msk [vmem:[%s175] sm:$0xff] %vm188, %v202
      $region32: #{bottleneck_d_forward.3} parent=23 // pred_fallthru
        _
      %p204 = scmp.lt.s32.totalorder %s18, 1
      %s205 = scalar_select %p204, %s18, 1
      %s206 = smul.addr %s205, 8
      %s207 = scalar_lea.vmem %s1, %s206
      %p208 = scmp.lt.s32.totalorder %s18, 1
      %s209 = scalar_select %p208, %s18, 1
      %s210 = smul.addr %s209, 8
      %s211 = scalar_lea.vmem %s2, %s210
      // Predicated region
      $region33: #{bottleneck_d_forward.3} parent=23 // pred_check
        %p212 = pneg %p72
      $region34: #{bottleneck_d_forward.3} parent=23 // pred_check_branch
        %214 = sbr.rel (%p212) target = $region36
      $region35: #{bottleneck_d_forward.3} parent=23 // pred_region
        _
      $region36: #{bottleneck_d_forward.3} parent=23 // pred_fallthru
        _
      // Predicated region
      $region37: #{bottleneck_d_forward.3} parent=23 // pred_check
        %p215 = pneg %p98
      $region38: #{bottleneck_d_forward.3} parent=23 // pred_check_branch
        %217 = sbr.rel (%p215) target = $region40
      $region39: #{bottleneck_d_forward.3} parent=23 // pred_region
        _
      $region40: #{bottleneck_d_forward.3} parent=23 // pred_fallthru
        _
    $region24: #{bottleneck_d_forward.3} parent=5 // pred_fallthru
      _
    %p218 = scmp.le.s32.totalorder 2, %s9
    // Predicated region
    $region41: #{bottleneck_d_forward.3} parent=5 // pred_check
      %p219 = pneg %p218
    $region42: #{bottleneck_d_forward.3} parent=5 // pred_check_branch
      %221 = sbr.rel (%p219) target = $region44
    $region43: #{bottleneck_d_forward.3} parent=5 // pred_region
      %s222 = ssub.s32 %s9, 2
      // Predicated region
      $region45: #{bottleneck_d_forward.3} parent=43 // pred_check
        %p223 = pneg %p78
      $region46: #{bottleneck_d_forward.3} parent=43 // pred_check_branch
        %225 = sbr.rel (%p223) target = $region48
      $region47: #{bottleneck_d_forward.3} parent=43 // pred_region
        %p226 = scmp.lt.s32.totalorder %s20, 1
        %s227 = scalar_select %p226, %s20, 1
        %s228 = smul.addr %s227, 8
        %s229 = scalar_lea.vmem %s1, %s228
      $region48: #{bottleneck_d_forward.3} parent=43 // pred_fallthru
        _
      // Predicated region
      $region49: #{bottleneck_d_forward.3} parent=43 // pred_check
        %p230 = pneg %p104
      $region50: #{bottleneck_d_forward.3} parent=43 // pred_check_branch
        %232 = sbr.rel (%p230) target = $region52
      $region51: #{bottleneck_d_forward.3} parent=43 // pred_region
        %p233 = scmp.lt.s32.totalorder %s20, 1
        %s234 = scalar_select %p233, %s20, 1
        %s235 = smul.addr %s234, 8
        %s236 = scalar_lea.vmem %s2, %s235
      $region52: #{bottleneck_d_forward.3} parent=43 // pred_fallthru
        _
    $region44: #{bottleneck_d_forward.3} parent=5 // pred_fallthru
      _
  $region6: #{bottleneck_d_forward.3} parent=0 // loop_footer
    %s13 = sadd.s32 1, %s9
  $region7: #{bottleneck_d_forward.3} parent=0 // loop_footer_branch
    %8 = sbr.rel target = $region3
  $region8: #{bottleneck_d_forward.3} parent=0 // loop_exit
    _

// kernel: bottleneck_d_forward.5
$region0: #{bottleneck_d_forward.5}
  #allocation0 [shape = 'u32[]', space=smem, size = 0x4, offset = 0x4, fixed_abs, tag = 'smem constant byte address 0x4 - core index']
  #allocation1 [shape = 'u32[72,128]{1,0:T(1,128)}', space=vmem, size = 0x9000, scoped, tag = 'internal scratch']
  %s0 = inlined_call_operand.vmem [shape: bf16[2,16,256], index: 0, kind: input, shape index: {}]
  %s1 = inlined_call_operand.vmem [shape: f32[16,1], index: 1, kind: input, shape index: {}]
  %s2 = inlined_call_operand.vmem [shape: f32[16,1], index: 2, kind: input, shape index: {}]
  %s3 = inlined_call_operand.vmem [shape: bf16[72,16], index: 3, kind: input, shape index: {}]
  %s4 = inlined_call_operand.vmem [shape: f32[9,256], index: 4, kind: input, shape index: {}]
  %s5 = inlined_call_operand.vmem [shape: f32[2,8,256], index: 5, kind: output, shape index: {}]
  %s6 = sld [smem:[#allocation0]]
  $region53: #{bottleneck_d_forward.5} parent=0
    _
  %s8 = ssub.s32 1, %s6
  %s9 = scalar_select 0, %s8, %s6
  loop: start=0, step=1, limit=4
  $region2: #{bottleneck_d_forward.5} parent=0 // loop_pre_header
    _
  $region3: #{bottleneck_d_forward.5} parent=0 // loop_header
    %s11 = sphi 0, %s15
    %p12 = scmp.ge.s32.totalorder %s11, 4
    %s21 = sphi 0, %s23
    %s24 = sphi 0, %s21
    %s25 = sphi 0, %s24
    %s41 = sphi 0, %s25
    %s45 = sphi 0, %s45
    %s47 = sphi 0, %s45
    %s48 = sphi 0, %s47
    %s62 = sphi 0, %s48
    %s66 = sphi 0, %s66
    %s68 = sphi 0, %s66
    %s69 = sphi 0, %s68
    %s83 = sphi 0, %s69
    %s87 = sphi 0, %s87
    %s89 = sphi 0, %s87
    %s90 = sphi 0, %s89
    %s104 = sphi 0, %s90
    %s108 = sphi 0, %s108
    %s110 = sphi 0, %s108
    %s111 = sphi 0, %s110
    %s125 = sphi 0, %s111
    %s131 = sphi 0, %s133
    %s134 = sphi 0, %s131
    %s135 = sphi 0, %s134
    %s151 = sphi 0, %s135
  $region4: #{bottleneck_d_forward.5} parent=0 // loop_header_branch
    %14 = sbr.rel (%p12) target = $region8
  $region5: #{bottleneck_d_forward.5} parent=0 // loop_body
    %s16 = ssub.s32 %s11, 1
    %s17 = ssub.s32 %s11, 2
    %s18 = sadd.s32 %s11, 1
    %s19 = ssub.s32 %s11, %s18
    %p20 = scmp.eq.s32.totalorder %s19, 0
    %s22 = sadd.s32 %s21, 1
    %s23 = scalar_select %p20, %s21, %s22
    %p26 = pneg %p20
    %p27 = scmp.eq.s32.totalorder %s11, 1
    %p28 = por %p26, %p27
    %p29 = scmp.ne.s32.totalorder %s21, %s24
    %p30 = scmp.eq.s32.totalorder %s11, 0
    %p31 = por %p29, %p30
    %p32 = scmp.ne.s32.totalorder %s21, %s24
    %p33 = scmp.eq.s32.totalorder %s16, 1
    %p34 = por %p32, %p33
    %p35 = scmp.ne.s32.totalorder %s24, %s25
    %p36 = scmp.eq.s32.totalorder %s16, 0
    %p37 = por %p35, %p36
    %p38 = scmp.ne.s32.totalorder %s24, %s25
    %p39 = scmp.eq.s32.totalorder %s17, 1
    %p40 = por %p38, %p39
    %p42 = scmp.ne.s32.totalorder %s25, %s41
    %p43 = scmp.eq.s32.totalorder %s17, 0
    %p44 = por %p42, %p43
    %s46 = sadd.s32 %s45, 1
    %p49 = scmp.eq.s32.totalorder %s11, 1
    %p50 = scmp.ne.s32.totalorder %s45, %s47
    %p51 = scmp.eq.s32.totalorder %s11, 0
    %p52 = por %p50, %p51
    %p53 = scmp.ne.s32.totalorder %s45, %s47
    %p54 = scmp.eq.s32.totalorder %s16, 1
    %p55 = por %p53, %p54
    %p56 = scmp.ne.s32.totalorder %s47, %s48
    %p57 = scmp.eq.s32.totalorder %s16, 0
    %p58 = por %p56, %p57
    %p59 = scmp.ne.s32.totalorder %s47, %s48
    %p60 = scmp.eq.s32.totalorder %s17, 1
    %p61 = por %p59, %p60
    %p63 = scmp.ne.s32.totalorder %s48, %s62
    %p64 = scmp.eq.s32.totalorder %s17, 0
    %p65 = por %p63, %p64
    %s67 = sadd.s32 %s66, 1
    %p70 = scmp.eq.s32.totalorder %s11, 1
    %p71 = scmp.ne.s32.totalorder %s66, %s68
    %p72 = scmp.eq.s32.totalorder %s11, 0
    %p73 = por %p71, %p72
    %p74 = scmp.ne.s32.totalorder %s66, %s68
    %p75 = scmp.eq.s32.totalorder %s16, 1
    %p76 = por %p74, %p75
    %p77 = scmp.ne.s32.totalorder %s68, %s69
    %p78 = scmp.eq.s32.totalorder %s16, 0
    %p79 = por %p77, %p78
    %p80 = scmp.ne.s32.totalorder %s68, %s69
    %p81 = scmp.eq.s32.totalorder %s17, 1
    %p82 = por %p80, %p81
    %p84 = scmp.ne.s32.totalorder %s69, %s83
    %p85 = scmp.eq.s32.totalorder %s17, 0
    %p86 = por %p84, %p85
    %s88 = sadd.s32 %s87, 1
    %p91 = scmp.eq.s32.totalorder %s11, 1
    %p92 = scmp.ne.s32.totalorder %s87, %s89
    %p93 = scmp.eq.s32.totalorder %s11, 0
    %p94 = por %p92, %p93
    %p95 = scmp.ne.s32.totalorder %s87, %s89
    %p96 = scmp.eq.s32.totalorder %s16, 1
    %p97 = por %p95, %p96
    %p98 = scmp.ne.s32.totalorder %s89, %s90
    %p99 = scmp.eq.s32.totalorder %s16, 0
    %p100 = por %p98, %p99
    %p101 = scmp.ne.s32.totalorder %s89, %s90
    %p102 = scmp.eq.s32.totalorder %s17, 1
    %p103 = por %p101, %p102
    %p105 = scmp.ne.s32.totalorder %s90, %s104
    %p106 = scmp.eq.s32.totalorder %s17, 0
    %p107 = por %p105, %p106
    %s109 = sadd.s32 %s108, 1
    %p112 = scmp.eq.s32.totalorder %s11, 1
    %p113 = scmp.ne.s32.totalorder %s108, %s110
    %p114 = scmp.eq.s32.totalorder %s11, 0
    %p115 = por %p113, %p114
    %p116 = scmp.ne.s32.totalorder %s108, %s110
    %p117 = scmp.eq.s32.totalorder %s16, 1
    %p118 = por %p116, %p117
    %p119 = scmp.ne.s32.totalorder %s110, %s111
    %p120 = scmp.eq.s32.totalorder %s16, 0
    %p121 = por %p119, %p120
    %p122 = scmp.ne.s32.totalorder %s110, %s111
    %p123 = scmp.eq.s32.totalorder %s17, 1
    %p124 = por %p122, %p123
    %p126 = scmp.ne.s32.totalorder %s111, %s125
    %p127 = scmp.eq.s32.totalorder %s17, 0
    %p128 = por %p126, %p127
    %s129 = ssub.s32 %s11, %s18
    %p130 = scmp.eq.s32.totalorder %s129, 0
    %s132 = sadd.s32 %s131, 1
    %s133 = scalar_select %p130, %s131, %s132
    %p136 = pneg %p130
    %p137 = scmp.eq.s32.totalorder %s11, 1
    %p138 = por %p136, %p137
    %p139 = scmp.ne.s32.totalorder %s131, %s134
    %p140 = scmp.eq.s32.totalorder %s11, 0
    %p141 = por %p139, %p140
    %p142 = scmp.ne.s32.totalorder %s131, %s134
    %p143 = scmp.eq.s32.totalorder %s16, 1
    %p144 = por %p142, %p143
    %p145 = scmp.ne.s32.totalorder %s134, %s135
    %p146 = scmp.eq.s32.totalorder %s16, 0
    %p147 = por %p145, %p146
    %p148 = scmp.ne.s32.totalorder %s134, %s135
    %p149 = scmp.eq.s32.totalorder %s17, 1
    %p150 = por %p148, %p149
    %p152 = scmp.ne.s32.totalorder %s135, %s151
    %p153 = scmp.eq.s32.totalorder %s17, 0
    %p154 = por %p152, %p153
    %p155 = scmp.le.s32.totalorder 1, %s11
    %p156 = scmp.lt.s32.totalorder %s11, 3
    %p157 = pnand %p155, %p156
    %p158 = pneg %p157
    // Predicated region
    $region9: #{bottleneck_d_forward.5} parent=5 // pred_check
      _
    $region10: #{bottleneck_d_forward.5} parent=5 // pred_check_branch
      %160 = sbr.rel (%p157) target = $region12
    $region11: #{bottleneck_d_forward.5} parent=5 // pred_region
      %s161 = ssub.s32 %s11, 1
      // Predicated region
      $region13: #{bottleneck_d_forward.5} parent=11 // pred_check
        %p162 = pneg %p58
      $region14: #{bottleneck_d_forward.5} parent=11 // pred_check_branch
        %164 = sbr.rel (%p162) target = $region16
      $region15: #{bottleneck_d_forward.5} parent=11 // pred_region
        _
      $region16: #{bottleneck_d_forward.5} parent=11 // pred_fallthru
        _
      // Predicated region
      $region17: #{bottleneck_d_forward.5} parent=11 // pred_check
        %p165 = pneg %p79
      $region18: #{bottleneck_d_forward.5} parent=11 // pred_check_branch
        %167 = sbr.rel (%p165) target = $region20
      $region19: #{bottleneck_d_forward.5} parent=11 // pred_region
        _
      $region20: #{bottleneck_d_forward.5} parent=11 // pred_fallthru
        _
      // Predicated region
      $region21: #{bottleneck_d_forward.5} parent=11 // pred_check
        %p168 = pneg %p100
      $region22: #{bottleneck_d_forward.5} parent=11 // pred_check_branch
        %170 = sbr.rel (%p168) target = $region24
      $region23: #{bottleneck_d_forward.5} parent=11 // pred_region
        _
      $region24: #{bottleneck_d_forward.5} parent=11 // pred_fallthru
        _
      // Predicated region
      $region25: #{bottleneck_d_forward.5} parent=11 // pred_check
        %p171 = pneg %p121
      $region26: #{bottleneck_d_forward.5} parent=11 // pred_check_branch
        %173 = sbr.rel (%p171) target = $region28
      $region27: #{bottleneck_d_forward.5} parent=11 // pred_region
        _
      $region28: #{bottleneck_d_forward.5} parent=11 // pred_fallthru
        _
    $region12: #{bottleneck_d_forward.5} parent=5 // pred_fallthru
      _
    %p174 = scmp.lt.s32.totalorder %s11, 2
    // Predicated region
    $region29: #{bottleneck_d_forward.5} parent=5 // pred_check
      %p175 = pneg %p174
    $region30: #{bottleneck_d_forward.5} parent=5 // pred_check_branch
      %177 = sbr.rel (%p175) target = $region32
    $region31: #{bottleneck_d_forward.5} parent=5 // pred_region
      // Predicated region
      $region33: #{bottleneck_d_forward.5} parent=31 // pred_check
        %p178 = pneg %p31
      $region34: #{bottleneck_d_forward.5} parent=31 // pred_check_branch
        %180 = sbr.rel (%p178) target = $region36
      $region35: #{bottleneck_d_forward.5} parent=31 // pred_region
        %p181 = scmp.lt.s32.totalorder %s11, 1
        %s182 = scalar_select %p181, %s11, 1
        %s183 = smul.addr %s182, 4
        %s184 = smul.addr %s183, 4
        %s185 = scalar_lea.vmem %s0, %s184
      $region36: #{bottleneck_d_forward.5} parent=31 // pred_fallthru
        _
    $region32: #{bottleneck_d_forward.5} parent=5 // pred_fallthru
      _
    %p186 = scmp.le.s32.totalorder 1, %s11
    %p187 = scmp.lt.s32.totalorder %s11, 3
    %p188 = pnand %p186, %p187
    %p189 = pneg %p188
    // Predicated region
    $region37: #{bottleneck_d_forward.5} parent=5 // pred_check
      _
    $region38: #{bottleneck_d_forward.5} parent=5 // pred_check_branch
      %191 = sbr.rel (%p188) target = $region40
    $region39: #{bottleneck_d_forward.5} parent=5 // pred_region
      %s192 = ssub.s32 %s11, 1
      %p193 = scmp.lt.s32.totalorder %s16, 1
      %s194 = scalar_select %p193, %s16, 1
      %s195 = smul.addr %s194, 4
      %s196 = smul.addr %s195, 4
      %s197 = scalar_lea.vmem %s0, %s196
      %p198 = pneg %p37
      %p199 = pneg %p34
      %p200 = pneg %p58
      %p201 = pneg %p55
      %p202 = pneg %p79
      %p203 = pneg %p76
      %p204 = pneg %p100
      %p205 = pneg %p97
      %p206 = pneg %p121
      %p207 = pneg %p118
      %p208 = pneg %p147
      %p209 = pneg %p144
      %p210 = scmp.lt.s32.totalorder %s16, 1
      %s211 = scalar_select %p210, %s16, 1
      %s212 = smul.addr %s211, 2
      %s213 = smul.addr %s212, 8
      %s214 = scalar_lea.vmem %s5, %s213
      %p215 = scmp.lt.s32.totalorder %s16, 1
      %s216 = scalar_select %p215, %s16, 1
      %s217 = smul.addr %s216, 4
      %s218 = smul.addr %s217, 4
      %s219 = scalar_lea.vmem %s0, %s218
      %p220 = scmp.lt.s32.totalorder %s16, 1
      %s221 = scalar_select %p220, %s16, 1
      %s222 = smul.addr %s221, 2
      %s223 = smul.addr %s222, 8
      %s224 = scalar_lea.vmem %s5, %s223
      %v226 = vld [vmem:[%s219] sm:$0xff]
      %v227 = vld [vmem:[%s219 + $0x8] sm:$0xff]
      %v228 = vld [vmem:[%s1] sm:$0xff]
      %v229 = vld [vmem:[%s1 + $0x8] sm:$0xff]
      %v230 = vunpack.c.l.bf16 %v226
      %v231 = vunpack.c.h.bf16 %v226
      %v232 = vunpack.c.l.bf16 %v227
      %v233 = vunpack.c.h.bf16 %v227
      %235 = vset.pattern.permute.xlu0 0
      %236 = vperm.xlu0 %235, %v228
      %v237 = vpop.permute.xlu0 %236
      %240 = vset.pattern.permute.xlu0 0
      %241 = vperm.xlu0 %240, %v229
      %v242 = vpop.permute.xlu0 %241
      %v244 = vmul.f32 %v230, %v237
      %v245 = vmul.f32 %v231, %v237
      %v246 = vmul.f32 %v232, %v242
      %v247 = vmul.f32 %v233, %v242
      %v248 = vld [vmem:[%s2] sm:$0xff]
      %v249 = vld [vmem:[%s2 + $0x8] sm:$0xff]
      %251 = vset.pattern.permute.xlu0 0
      %252 = vperm.xlu0 %251, %v248
      %v253 = vpop.permute.xlu0 %252
      %256 = vset.pattern.permute.xlu0 0
      %257 = vperm.xlu0 %256, %v249
      %v258 = vpop.permute.xlu0 %257
      %v260 = vadd.f32 %v244, %v253
      %v261 = vadd.f32 %v245, %v253
      %v262 = vadd.f32 %v246, %v258
      %v263 = vadd.f32 %v247, %v258
      %v264 = vmax.f32 %v260, 0.0
      %v265 = vmax.f32 %v261, 0.0
      %v266 = vmax.f32 %v262, 0.0
      %v267 = vmax.f32 %v263, 0.0
      %v268 = vld [vmem:[%s3] sm:$0xf]
      %v269 = vld [vmem:[%s3 + $0x4] sm:$0xf]
      %v270 = vld [vmem:[%s3 + $0x8] sm:$0xf]
      %v271 = vld [vmem:[%s3 + $0xc] sm:$0xf]
      %v272 = vld [vmem:[%s3 + $0x10] sm:$0xf]
      %v273 = vld [vmem:[%s3 + $0x14] sm:$0xf]
      %v274 = vld [vmem:[%s3 + $0x18] sm:$0xf]
      %v275 = vld [vmem:[%s3 + $0x1c] sm:$0xf]
      %v276 = vld [vmem:[%s3 + $0x20] sm:$0xf]
      %v277 = vpack.c.bf16 %v266, %v264
      %v278 = vpack.c.bf16 %v267, %v265
      %v288 = vunpack.c.l.b16 %v268
      %v289 = vunpack.c.l.b16 %v269
      %v290 = vunpack.c.l.b16 %v270
      %v291 = vunpack.c.l.b16 %v271
      %v292 = vunpack.c.l.b16 %v272
      %v293 = vunpack.c.l.b16 %v273
      %v294 = vunpack.c.l.b16 %v274
      %v295 = vunpack.c.l.b16 %v275
      %v296 = vunpack.c.l.b16 %v276
      %v297 = vpack.c.b16 %v289, %v288
      %v298 = vpack.c.b16 %v291, %v290
      %v299 = vpack.c.b16 %v293, %v292
      %v300 = vpack.c.b16 %v295, %v294
      %v301 = vpack.c.b16 %v296, %v296
      %vm302 = vcmask 130048
      %v304 = vsel %vm302, %v297, 0
      %v307 = vsel %vm302, %v298, 0
      %v310 = vsel %vm302, %v299, 0
      %v313 = vsel %vm302, %v300, 0
      %v316 = vsel %vm302, %v301, 0
      %318 = vmatpush.bf16.msra.mxu0 0
      %319 = vmatpush.bf16.msra.mxu0 0
      %320 = vmatpush.bf16.msra.mxu0 0
      %321 = vmatpush.bf16.msra.mxu0 0
      %322 = vmatpush.bf16.msra.mxu0 0
      %323 = vmatpush.bf16.msra.mxu0 0
      %324 = vmatpush.bf16.msra.mxu0 0
      %325 = vmatpush.bf16.msra.mxu0 %v277
      %326 = vmatmul.bf16.gmra.mxu0 %v304
      %v327 = vpop.f32.mrf.mxu0
      %v328 = vadd.f32 0.0, %v327
      %v329 = vpop.f32.mrf.mxu0
      %v330 = vadd.f32 0.0, %v329
      %331 = vmatmul.bf16.gmra.mxu0 %v307
      %v332 = vpop.f32.mrf.mxu0
      %v333 = vadd.f32 0.0, %v332
      %v334 = vpop.f32.mrf.mxu0
      %v335 = vadd.f32 0.0, %v334
      %336 = vmatmul.bf16.gmra.mxu0 %v310
      %v337 = vpop.f32.mrf.mxu0
      %v338 = vadd.f32 0.0, %v337
      %v339 = vpop.f32.mrf.mxu0
      %v340 = vadd.f32 0.0, %v339
      %341 = vmatmul.bf16.gmra.mxu0 %v313
      %v342 = vpop.f32.mrf.mxu0
      %v343 = vadd.f32 0.0, %v342
      %v344 = vpop.f32.mrf.mxu0
      %v345 = vadd.f32 0.0, %v344
      %346 = vmatmul.bf16.gmra.mxu0 %v316
      %v347 = vpop.f32.mrf.mxu0
      %v348 = vadd.f32 0.0, %v347
      %v349 = vpop.f32.mrf.mxu0
      %350 = vdwg.mxu0
      %351 = vmatpush.bf16.msra.mxu0 0
      %352 = vmatpush.bf16.msra.mxu0 0
      %353 = vmatpush.bf16.msra.mxu0 0
      %354 = vmatpush.bf16.msra.mxu0 0
      %355 = vmatpush.bf16.msra.mxu0 0
      %356 = vmatpush.bf16.msra.mxu0 0
      %357 = vmatpush.bf16.msra.mxu0 0
      %358 = vmatpush.bf16.msra.mxu0 %v278
      %359 = vmatmul.bf16.gmra.mxu0 %v304
      %v360 = vpop.f32.mrf.mxu0
      %v361 = vadd.f32 0.0, %v360
      %v362 = vpop.f32.mrf.mxu0
      %v363 = vadd.f32 0.0, %v362
      %364 = vmatmul.bf16.gmra.mxu0 %v307
      %v365 = vpop.f32.mrf.mxu0
      %v366 = vadd.f32 0.0, %v365
      %v367 = vpop.f32.mrf.mxu0
      %v368 = vadd.f32 0.0, %v367
      %369 = vmatmul.bf16.gmra.mxu0 %v310
      %v370 = vpop.f32.mrf.mxu0
      %v371 = vadd.f32 0.0, %v370
      %v372 = vpop.f32.mrf.mxu0
      %v373 = vadd.f32 0.0, %v372
      %374 = vmatmul.bf16.gmra.mxu0 %v313
      %v375 = vpop.f32.mrf.mxu0
      %v376 = vadd.f32 0.0, %v375
      %v377 = vpop.f32.mrf.mxu0
      %v378 = vadd.f32 0.0, %v377
      %379 = vmatmul.bf16.gmra.mxu0 %v316
      %v380 = vpop.f32.mrf.mxu0
      %v381 = vadd.f32 0.0, %v380
      %v382 = vpop.f32.mrf.mxu0
      %383 = vdwg.mxu0
      %v384 = vld [vmem:[%s4] sm:$0xff]
      %v385 = vld [vmem:[%s4 + $0x8] sm:$0xff]
      %v386 = vld [vmem:[%s4 + $0x10] sm:$0x1]
      %v387 = vld [vmem:[%s4 + $0x18] sm:$0x1]
      %388 = vrot.lane.b32.xlu0 %v328, 17
      %v389 = vpop.permute.xlu0 %388
      %390 = vrot.lane.b32.xlu0 %v361, 17
      %v391 = vpop.permute.xlu0 %390
      %v392 = vlaneseq
      %v393 = vand.u32 %v392, 127
      %vm394 = vcmp.lt.s32.totalorder %v393, 17
      %v395 = vsel %vm394, %v389, %v391
      %v396 = vsel %vm394, %v391, %v389
      %v397 = vperm.slane %v384, 0
      %v398 = vperm.slane %v385, 0
      %v399 = vmul.f32 %v396, %v397
      %v400 = vmul.f32 %v395, %v398
      %401 = vrot.lane.b32.xlu0 %v330, 16
      %v402 = vpop.permute.xlu0 %401
      %403 = vrot.lane.b32.xlu0 %v363, 16
      %v404 = vpop.permute.xlu0 %403
      %vm405 = vcmp.lt.s32.totalorder %v393, 16
      %v406 = vsel %vm405, %v402, %v404
      %v407 = vsel %vm405, %v404, %v402
      %v408 = vperm.slane %v384, 1
      %v409 = vperm.slane %v385, 1
      %v410 = vmul.f32 %v407, %v408
      %v411 = vmul.f32 %v406, %v409
      %v412 = vadd.f32 %v399, %v410
      %v413 = vadd.f32 %v400, %v411
      %414 = vrot.lane.b32.xlu0 %v333, 15
      %v415 = vpop.permute.xlu0 %414
      %416 = vrot.lane.b32.xlu0 %v366, 15
      %v417 = vpop.permute.xlu0 %416
      %vm418 = vcmp.lt.s32.totalorder %v393, 15
      %v419 = vsel %vm418, %v415, %v417
      %v420 = vsel %vm418, %v417, %v415
      %v421 = vperm.slane %v384, 2
      %v422 = vperm.slane %v385, 2
      %v423 = vmul.f32 %v420, %v421
      %v424 = vmul.f32 %v419, %v422
      %v425 = vadd.f32 %v412, %v423
      %v426 = vadd.f32 %v413, %v424
      %427 = vrot.lane.b32.xlu0 %v335, 1
      %v428 = vpop.permute.xlu0 %427
      %429 = vrot.lane.b32.xlu0 %v368, 1
      %v430 = vpop.permute.xlu0 %429
      %vm431 = vcmp.lt.s32.totalorder %v393, 1
      %v432 = vsel %vm431, %v428, %v430
      %v433 = vsel %vm431, %v430, %v428
      %v434 = vperm.slane %v384, 3
      %v435 = vperm.slane %v385, 3
      %v436 = vmul.f32 %v433, %v434
      %v437 = vmul.f32 %v432, %v435
      %v438 = vadd.f32 %v425, %v436
      %v439 = vadd.f32 %v426, %v437
      %v440 = vperm.slane %v384, 4
      %v441 = vperm.slane %v385, 4
      %v442 = vmul.f32 %v338, %v440
      %v443 = vmul.f32 %v371, %v441
      %v444 = vadd.f32 %v438, %v442
      %v445 = vadd.f32 %v439, %v443
      %446 = vrot.lane.b32.xlu0 %v340, 127
      %v447 = vpop.permute.xlu0 %446
      %448 = vrot.lane.b32.xlu0 %v373, 127
      %v449 = vpop.permute.xlu0 %448
      %vm450 = vcmp.lt.s32.totalorder %v393, 127
      %v451 = vsel %vm450, %v447, %v449
      %v452 = vsel %vm450, %v449, %v447
      %v453 = vperm.slane %v384, 5
      %v454 = vperm.slane %v385, 5
      %v455 = vmul.f32 %v451, %v453
      %v456 = vmul.f32 %v452, %v454
      %v457 = vadd.f32 %v444, %v455
      %v458 = vadd.f32 %v445, %v456
      %459 = vrot.lane.b32.xlu0 %v343, 113
      %v460 = vpop.permute.xlu0 %459
      %461 = vrot.lane.b32.xlu0 %v376, 113
      %v462 = vpop.permute.xlu0 %461
      %vm463 = vcmp.lt.s32.totalorder %v393, 113
      %v464 = vsel %vm463, %v460, %v462
      %v465 = vsel %vm463, %v462, %v460
      %v466 = vperm.slane %v384, 6
      %v467 = vperm.slane %v385, 6
      %v468 = vmul.f32 %v464, %v466
      %v469 = vmul.f32 %v465, %v467
      %v470 = vadd.f32 %v457, %v468
      %v471 = vadd.f32 %v458, %v469
      %472 = vrot.lane.b32.xlu0 %v345, 112
      %v473 = vpop.permute.xlu0 %472
      %474 = vrot.lane.b32.xlu0 %v378, 112
      %v475 = vpop.permute.xlu0 %474
      %vm476 = vcmp.lt.s32.totalorder %v393, 112
      %v477 = vsel %vm476, %v473, %v475
      %v478 = vsel %vm476, %v475, %v473
      %v479 = vperm.slane %v384, 7
      %v480 = vperm.slane %v385, 7
      %v481 = vmul.f32 %v477, %v479
      %v482 = vmul.f32 %v478, %v480
      %v483 = vadd.f32 %v470, %v481
      %v484 = vadd.f32 %v471, %v482
      %485 = vrot.lane.b32.xlu0 %v348, 111
      %v486 = vpop.permute.xlu0 %485
      %487 = vrot.lane.b32.xlu0 %v381, 111
      %v488 = vpop.permute.xlu0 %487
      %vm489 = vcmp.lt.s32.totalorder %v393, 111
      %v490 = vsel %vm489, %v486, %v488
      %v491 = vsel %vm489, %v488, %v486
      %v492 = vperm.slane %v386, 0
      %v493 = vperm.slane %v387, 0
      %v494 = vmul.f32 %v490, %v492
      %v495 = vmul.f32 %v491, %v493
      %v496 = vadd.f32 %v483, %v494
      %v497 = vadd.f32 %v484, %v495
      %498 = vst [vmem:[%s224] sm:$0xff] %v496
      %499 = vst [vmem:[%s224 + $0x8] sm:$0xff] %v497
      %p500 = scmp.lt.s32.totalorder %s16, 1
      %s501 = scalar_select %p500, %s16, 1
      %s502 = smul.addr %s501, 2
      %s503 = smul.addr %s502, 8
      %s504 = scalar_lea.vmem %s5, %s503
      // Predicated region
      $region41: #{bottleneck_d_forward.5} parent=39 // pred_check
        %p505 = pneg %p144
      $region42: #{bottleneck_d_forward.5} parent=39 // pred_check_branch
        %507 = sbr.rel (%p505) target = $region44
      $region43: #{bottleneck_d_forward.5} parent=39 // pred_region
        _
      $region44: #{bottleneck_d_forward.5} parent=39 // pred_fallthru
        _
    $region40: #{bottleneck_d_forward.5} parent=5 // pred_fallthru
      _
    %p508 = scmp.le.s32.totalorder 2, %s11
    // Predicated region
    $region45: #{bottleneck_d_forward.5} parent=5 // pred_check
      %p509 = pneg %p508
    $region46: #{bottleneck_d_forward.5} parent=5 // pred_check_branch
      %511 = sbr.rel (%p509) target = $region48
    $region47: #{bottleneck_d_forward.5} parent=5 // pred_region
      %s512 = ssub.s32 %s11, 2
      // Predicated region
      $region49: #{bottleneck_d_forward.5} parent=47 // pred_check
        %p513 = pneg %p150
      $region50: #{bottleneck_d_forward.5} parent=47 // pred_check_branch
        %515 = sbr.rel (%p513) target = $region52
      $region51: #{bottleneck_d_forward.5} parent=47 // pred_region
        %p516 = scmp.lt.s32.totalorder %s17, 1
        %s517 = scalar_select %p516, %s17, 1
        %s518 = smul.addr %s517, 2
        %s519 = smul.addr %s518, 8
        %s520 = scalar_lea.vmem %s5, %s519
      $region52: #{bottleneck_d_forward.5} parent=47 // pred_fallthru
        _
    $region48: #{bottleneck_d_forward.5} parent=5 // pred_fallthru
      _
  $region6: #{bottleneck_d_forward.5} parent=0 // loop_footer
    %s15 = sadd.s32 1, %s11
  $region7: #{bottleneck_d_forward.5} parent=0 // loop_footer_branch
    %10 = sbr.rel target = $region3
  $region8: #{bottleneck_d_forward.5} parent=0 // loop_exit
    _

// kernel: bottleneck_d_forward.4
$region0: #{bottleneck_d_forward.4}
  #allocation0 [shape = 'u32[]', space=smem, size = 0x4, offset = 0x4, fixed_abs, tag = 'smem constant byte address 0x4 - core index']
  #allocation1 [shape = 'u32[72,128]{1,0:T(1,128)}', space=vmem, size = 0x9000, scoped, tag = 'internal scratch']
  #allocation2 [shape = 'f32[16,1]{1,0:T(8,128)}', space=vmem, size = 0x2000, scoped, tag = 'scratch operand']
  #allocation3 [shape = 'f32[16,1]{1,0:T(8,128)}', space=vmem, size = 0x2000, scoped, tag = 'scratch operand']
  %s0 = inlined_call_operand.vmem [shape: f32[2,8,256], index: 0, kind: input, shape index: {}]
  %s1 = inlined_call_operand.vmem [shape: f32[8,1], index: 1, kind: input, shape index: {}]
  %s2 = inlined_call_operand.vmem [shape: f32[8,1], index: 2, kind: input, shape index: {}]
  %s3 = inlined_call_operand.vmem [shape: bf16[16,8], index: 3, kind: input, shape index: {}]
  %s4 = inlined_call_operand.vmem [shape: bf16[2,16,256], index: 4, kind: output, shape index: {0}]
  %s5 = inlined_call_operand.vmem [shape: f32[2,16,1], index: 5, kind: output, shape index: {1}]
  %s6 = inlined_call_operand.vmem [shape: f32[2,16,1], index: 6, kind: output, shape index: {2}]
  %7 = xla_tuple %s4, %s5, %s6
  %s8 = sld [smem:[#allocation0]]
  $region110: #{bottleneck_d_forward.4} parent=0
    _
  %s10 = ssub.s32 1, %s8
  %s11 = scalar_select 0, %s10, %s8
  $region1: #{bottleneck_d_forward.4} parent=0
    #allocation4 [shape = 'u8[8192]{0}', space=vmem, size = 0x2000, scoped, tag = 'output window, operand 0']
    loop: start=0, step=1, limit=6
    $region2: #{bottleneck_d_forward.4} parent=1 // loop_pre_header
      _
    $region3: #{bottleneck_d_forward.4} parent=1 // loop_header
      %s13 = sphi 0, %s17
      %p14 = scmp.ge.s32.totalorder %s13, 6
      %s20 = sphi 0, %s32
      %s21 = sphi 0, %s28
      %s22 = sphi 0, %s20
      %s23 = sphi 0, %s21
      %s24 = sphi 0, %s22
      %s25 = sphi 0, %s23
      %s37 = sphi 0, %s39
      %s40 = sphi 0, %s37
      %s41 = sphi 0, %s40
      %s57 = sphi 0, %s41
      %s61 = sphi 0, %s61
      %s63 = sphi 0, %s61
      %s64 = sphi 0, %s63
      %s78 = sphi 0, %s64
      %s82 = sphi 0, %s82
      %s84 = sphi 0, %s82
      %s85 = sphi 0, %s84
      %s99 = sphi 0, %s85
      %s103 = sphi 0, %s103
      %s105 = sphi 0, %s103
      %s106 = sphi 0, %s105
      %s120 = sphi 0, %s106
      %s128 = sphi 0, %s130
      %s131 = sphi 0, %s128
      %s132 = sphi 0, %s131
      %s148 = sphi 0, %s132
      %s154 = sphi 0, %s156
      %s157 = sphi 0, %s154
      %s158 = sphi 0, %s157
      %s174 = sphi 0, %s158
      %s180 = sphi 0, %s182
      %s183 = sphi 0, %s180
      %s184 = sphi 0, %s183
      %s200 = sphi 0, %s184
    $region4: #{bottleneck_d_forward.4} parent=1 // loop_header_branch
      %16 = sbr.rel (%p14) target = $region8
    $region5: #{bottleneck_d_forward.4} parent=1 // loop_body
      %s18 = ssub.s32 %s13, 1
      %s19 = ssub.s32 %s13, 2
      %s26 = sadd.s32 1, %s21
      %p27 = scmp.ge.s32.totalorder %s26, 2
      %s28 = scalar_select %p27, 0, %s26
      %s29 = sadd.s32 1, %s20
      %s30 = scalar_select %p27, %s29, %s20
      %p31 = scmp.ge.s32.totalorder %s30, 2
      %s32 = scalar_select %p31, 0, %s30
      %s33 = ssub.s32 %s20, %s32
      %s34 = ssub.s32 %s21, %s28
      %s35 = sor.u32 %s33, %s34
      %p36 = scmp.eq.s32.totalorder %s35, 0
      %s38 = sadd.s32 %s37, 1
      %s39 = scalar_select %p36, %s37, %s38
      %p42 = pneg %p36
      %p43 = scmp.eq.s32.totalorder %s13, 3
      %p44 = por %p42, %p43
      %p45 = scmp.ne.s32.totalorder %s37, %s40
      %p46 = scmp.eq.s32.totalorder %s13, 0
      %p47 = por %p45, %p46
      %p48 = scmp.ne.s32.totalorder %s37, %s40
      %p49 = scmp.eq.s32.totalorder %s18, 3
      %p50 = por %p48, %p49
      %p51 = scmp.ne.s32.totalorder %s40, %s41
      %p52 = scmp.eq.s32.totalorder %s18, 0
      %p53 = por %p51, %p52
      %p54 = scmp.ne.s32.totalorder %s40, %s41
      %p55 = scmp.eq.s32.totalorder %s19, 3
      %p56 = por %p54, %p55
      %p58 = scmp.ne.s32.totalorder %s41, %s57
      %p59 = scmp.eq.s32.totalorder %s19, 0
      %p60 = por %p58, %p59
      %s62 = sadd.s32 %s61, 1
      %p65 = scmp.eq.s32.totalorder %s13, 3
      %p66 = scmp.ne.s32.totalorder %s61, %s63
      %p67 = scmp.eq.s32.totalorder %s13, 0
      %p68 = por %p66, %p67
      %p69 = scmp.ne.s32.totalorder %s61, %s63
      %p70 = scmp.eq.s32.totalorder %s18, 3
      %p71 = por %p69, %p70
      %p72 = scmp.ne.s32.totalorder %s63, %s64
      %p73 = scmp.eq.s32.totalorder %s18, 0
      %p74 = por %p72, %p73
      %p75 = scmp.ne.s32.totalorder %s63, %s64
      %p76 = scmp.eq.s32.totalorder %s19, 3
      %p77 = por %p75, %p76
      %p79 = scmp.ne.s32.totalorder %s64, %s78
      %p80 = scmp.eq.s32.totalorder %s19, 0
      %p81 = por %p79, %p80
      %s83 = sadd.s32 %s82, 1
      %p86 = scmp.eq.s32.totalorder %s13, 3
      %p87 = scmp.ne.s32.totalorder %s82, %s84
      %p88 = scmp.eq.s32.totalorder %s13, 0
      %p89 = por %p87, %p88
      %p90 = scmp.ne.s32.totalorder %s82, %s84
      %p91 = scmp.eq.s32.totalorder %s18, 3
      %p92 = por %p90, %p91
      %p93 = scmp.ne.s32.totalorder %s84, %s85
      %p94 = scmp.eq.s32.totalorder %s18, 0
      %p95 = por %p93, %p94
      %p96 = scmp.ne.s32.totalorder %s84, %s85
      %p97 = scmp.eq.s32.totalorder %s19, 3
      %p98 = por %p96, %p97
      %p100 = scmp.ne.s32.totalorder %s85, %s99
      %p101 = scmp.eq.s32.totalorder %s19, 0
      %p102 = por %p100, %p101
      %s104 = sadd.s32 %s103, 1
      %p107 = scmp.eq.s32.totalorder %s13, 3
      %p108 = scmp.ne.s32.totalorder %s103, %s105
      %p109 = scmp.eq.s32.totalorder %s13, 0
      %p110 = por %p108, %p109
      %p111 = scmp.ne.s32.totalorder %s103, %s105
      %p112 = scmp.eq.s32.totalorder %s18, 3
      %p113 = por %p111, %p112
      %p114 = scmp.ne.s32.totalorder %s105, %s106
      %p115 = scmp.eq.s32.totalorder %s18, 0
      %p116 = por %p114, %p115
      %p117 = scmp.ne.s32.totalorder %s105, %s106
      %p118 = scmp.eq.s32.totalorder %s19, 3
      %p119 = por %p117, %p118
      %p121 = scmp.ne.s32.totalorder %s106, %s120
      %p122 = scmp.eq.s32.totalorder %s19, 0
      %p123 = por %p121, %p122
      %s124 = ssub.s32 %s20, %s32
      %s125 = ssub.s32 %s21, %s28
      %s126 = sor.u32 %s124, %s125
      %p127 = scmp.eq.s32.totalorder %s126, 0
      %s129 = sadd.s32 %s128, 1
      %s130 = scalar_select %p127, %s128, %s129
      %p133 = pneg %p127
      %p134 = scmp.eq.s32.totalorder %s13, 3
      %p135 = por %p133, %p134
      %p136 = scmp.ne.s32.totalorder %s128, %s131
      %p137 = scmp.eq.s32.totalorder %s13, 0
      %p138 = por %p136, %p137
      %p139 = scmp.ne.s32.totalorder %s128, %s131
      %p140 = scmp.eq.s32.totalorder %s18, 3
      %p141 = por %p139, %p140
      %p142 = scmp.ne.s32.totalorder %s131, %s132
      %p143 = scmp.eq.s32.totalorder %s18, 0
      %p144 = por %p142, %p143
      %p145 = scmp.ne.s32.totalorder %s131, %s132
      %p146 = scmp.eq.s32.totalorder %s19, 3
      %p147 = por %p145, %p146
      %p149 = scmp.ne.s32.totalorder %s132, %s148
      %p150 = scmp.eq.s32.totalorder %s19, 0
      %p151 = por %p149, %p150
      %s152 = ssub.s32 %s20, %s32
      %p153 = scmp.eq.s32.totalorder %s152, 0
      %s155 = sadd.s32 %s154, 1
      %s156 = scalar_select %p153, %s154, %s155
      %p159 = pneg %p153
      %p160 = scmp.eq.s32.totalorder %s13, 3
      %p161 = por %p159, %p160
      %p162 = scmp.ne.s32.totalorder %s154, %s157
      %p163 = scmp.eq.s32.totalorder %s13, 0
      %p164 = por %p162, %p163
      %p165 = scmp.ne.s32.totalorder %s154, %s157
      %p166 = scmp.eq.s32.totalorder %s18, 3
      %p167 = por %p165, %p166
      %p168 = scmp.ne.s32.totalorder %s157, %s158
      %p169 = scmp.eq.s32.totalorder %s18, 0
      %p170 = por %p168, %p169
      %p171 = scmp.ne.s32.totalorder %s157, %s158
      %p172 = scmp.eq.s32.totalorder %s19, 3
      %p173 = por %p171, %p172
      %p175 = scmp.ne.s32.totalorder %s158, %s174
      %p176 = scmp.eq.s32.totalorder %s19, 0
      %p177 = por %p175, %p176
      %s178 = ssub.s32 %s20, %s32
      %p179 = scmp.eq.s32.totalorder %s178, 0
      %s181 = sadd.s32 %s180, 1
      %s182 = scalar_select %p179, %s180, %s181
      %p185 = pneg %p179
      %p186 = scmp.eq.s32.totalorder %s13, 3
      %p187 = por %p185, %p186
      %p188 = scmp.ne.s32.totalorder %s180, %s183
      %p189 = scmp.eq.s32.totalorder %s13, 0
      %p190 = por %p188, %p189
      %p191 = scmp.ne.s32.totalorder %s180, %s183
      %p192 = scmp.eq.s32.totalorder %s18, 3
      %p193 = por %p191, %p192
      %p194 = scmp.ne.s32.totalorder %s183, %s184
      %p195 = scmp.eq.s32.totalorder %s18, 0
      %p196 = por %p194, %p195
      %p197 = scmp.ne.s32.totalorder %s183, %s184
      %p198 = scmp.eq.s32.totalorder %s19, 3
      %p199 = por %p197, %p198
      %p201 = scmp.ne.s32.totalorder %s184, %s200
      %p202 = scmp.eq.s32.totalorder %s19, 0
      %p203 = por %p201, %p202
      %p204 = scmp.le.s32.totalorder 1, %s13
      %p205 = scmp.lt.s32.totalorder %s13, 5
      %p206 = pnand %p204, %p205
      %p207 = pneg %p206
      // Predicated region
      $region9: #{bottleneck_d_forward.4} parent=5 // pred_check
        _
      $region10: #{bottleneck_d_forward.4} parent=5 // pred_check_branch
        %209 = sbr.rel (%p206) target = $region12
      $region11: #{bottleneck_d_forward.4} parent=5 // pred_region
        %s210 = ssub.s32 %s13, 1
        // Predicated region
        $region13: #{bottleneck_d_forward.4} parent=11 // pred_check
          %p211 = pneg %p74
        $region14: #{bottleneck_d_forward.4} parent=11 // pred_check_branch
          %213 = sbr.rel (%p211) target = $region16
        $region15: #{bottleneck_d_forward.4} parent=11 // pred_region
          _
        $region16: #{bottleneck_d_forward.4} parent=11 // pred_fallthru
          _
        // Predicated region
        $region17: #{bottleneck_d_forward.4} parent=11 // pred_check
          %p214 = pneg %p95
        $region18: #{bottleneck_d_forward.4} parent=11 // pred_check_branch
          %216 = sbr.rel (%p214) target = $region20
        $region19: #{bottleneck_d_forward.4} parent=11 // pred_region
          _
        $region20: #{bottleneck_d_forward.4} parent=11 // pred_fallthru
          _
        // Predicated region
        $region21: #{bottleneck_d_forward.4} parent=11 // pred_check
          %p217 = pneg %p116
        $region22: #{bottleneck_d_forward.4} parent=11 // pred_check_branch
          %219 = sbr.rel (%p217) target = $region24
        $region23: #{bottleneck_d_forward.4} parent=11 // pred_region
          _
        $region24: #{bottleneck_d_forward.4} parent=11 // pred_fallthru
          _
      $region12: #{bottleneck_d_forward.4} parent=5 // pred_fallthru
        _
      %p220 = scmp.lt.s32.totalorder %s13, 4
      // Predicated region
      $region25: #{bottleneck_d_forward.4} parent=5 // pred_check
        %p221 = pneg %p220
      $region26: #{bottleneck_d_forward.4} parent=5 // pred_check_branch
        %223 = sbr.rel (%p221) target = $region28
      $region27: #{bottleneck_d_forward.4} parent=5 // pred_region
        // Predicated region
        $region29: #{bottleneck_d_forward.4} parent=27 // pred_check
          %p224 = pneg %p47
        $region30: #{bottleneck_d_forward.4} parent=27 // pred_check_branch
          %226 = sbr.rel (%p224) target = $region32
        $region31: #{bottleneck_d_forward.4} parent=27 // pred_region
          %p227 = scmp.lt.s32.totalorder %s20, 1
          %s228 = scalar_select %p227, %s20, 1
          %p229 = scmp.lt.s32.totalorder %s21, 1
          %s230 = scalar_select %p229, %s21, 1
          %s231 = smul.addr %s228, 2
          %s232 = sadd.s32 %s230, %s231
          %s233 = smul.addr %s232, 8
          %s234 = scalar_lea.vmem %s0, %s233
        $region32: #{bottleneck_d_forward.4} parent=27 // pred_fallthru
          _
      $region28: #{bottleneck_d_forward.4} parent=5 // pred_fallthru
        _
      %p235 = scmp.le.s32.totalorder 1, %s13
      %p236 = scmp.lt.s32.totalorder %s13, 5
      %p237 = pnand %p235, %p236
      %p238 = pneg %p237
      // Predicated region
      $region33: #{bottleneck_d_forward.4} parent=5 // pred_check
        _
      $region34: #{bottleneck_d_forward.4} parent=5 // pred_check_branch
        %240 = sbr.rel (%p237) target = $region36
      $region35: #{bottleneck_d_forward.4} parent=5 // pred_region
        %s241 = ssub.s32 %s13, 1
        %p242 = scmp.lt.s32.totalorder %s22, 1
        %s243 = scalar_select %p242, %s22, 1
        %p244 = scmp.lt.s32.totalorder %s23, 1
        %s245 = scalar_select %p244, %s23, 1
        %s246 = smul.addr %s243, 2
        %s247 = sadd.s32 %s245, %s246
        %s248 = smul.addr %s247, 8
        %s249 = scalar_lea.vmem %s0, %s248
        %p250 = pneg %p53
        %p251 = pneg %p50
        %p252 = pneg %p74
        %p253 = pneg %p71
        %p254 = pneg %p95
        %p255 = pneg %p92
        %p256 = pneg %p116
        %p257 = pneg %p113
        %p258 = pneg %p144
        %p259 = pneg %p141
        %s260 = sand.u32 %s131, 1
        %s261 = sand.u32 %s131, 1
        %s262 = smul.addr %s261, 8
        %s263 = scalar_lea.vmem [#allocation4], %s262
        %p264 = pneg %p170
        %p265 = pneg %p167
        %p266 = scmp.lt.s32.totalorder %s22, 1
        %s267 = scalar_select %p266, %s22, 1
        %s268 = smul.addr %s267, 2
        %s269 = smul.addr %s268, 8
        %s270 = scalar_lea.vmem %s5, %s269
        %p271 = pneg %p196
        %p272 = pneg %p193
        %p273 = scmp.lt.s32.totalorder %s22, 1
        %s274 = scalar_select %p273, %s22, 1
        %s275 = smul.addr %s274, 2
        %s276 = smul.addr %s275, 8
        %s277 = scalar_lea.vmem %s6, %s276
        %p278 = scmp.lt.s32.totalorder %s22, 1
        %s279 = scalar_select %p278, %s22, 1
        %p280 = scmp.lt.s32.totalorder %s23, 1
        %s281 = scalar_select %p280, %s23, 1
        %s282 = smul.addr %s279, 2
        %s283 = sadd.s32 %s281, %s282
        %s284 = smul.addr %s283, 8
        %s285 = scalar_lea.vmem %s0, %s284
        %p286 = scmp.lt.s32.totalorder %s22, 1
        %s287 = scalar_select %p286, %s22, 1
        %s288 = smul.addr %s287, 2
        %s289 = smul.addr %s288, 8
        %s290 = scalar_lea.vmem %s5, %s289
        %p291 = scmp.lt.s32.totalorder %s22, 1
        %s292 = scalar_select %p291, %s22, 1
        %s293 = smul.addr %s292, 2
        %s294 = smul.addr %s293, 8
        %s295 = scalar_lea.vmem %s6, %s294
        %p297 = scmp.eq.s32.totalorder %s23, 0
        // Predicated region
        $region37: #{bottleneck_d_forward.4} parent=35 // pred_check
          %p298 = pneg %p297
        $region38: #{bottleneck_d_forward.4} parent=35 // pred_check_branch
          %300 = sbr.rel (%p298) target = $region40
        $region39: #{bottleneck_d_forward.4} parent=35 // pred_region
          %vm301 = vcmask 7168
          %302 = vst.msk [vmem:[#allocation2] sm:$0xff] %vm301, 0.0
          %303 = vst.msk [vmem:[#allocation2 + $0x8] sm:$0xff] %vm301, 0.0
          %304 = vst.msk [vmem:[#allocation3] sm:$0xff] %vm301, 0.0
          %305 = vst.msk [vmem:[#allocation3 + $0x8] sm:$0xff] %vm301, 0.0
        $region40: #{bottleneck_d_forward.4} parent=35 // pred_fallthru
          _
        %v306 = vld [vmem:[%s285] sm:$0xff]
        %v307 = vld [vmem:[%s1] sm:$0xff]
        %309 = vset.pattern.permute.xlu0 0
        %310 = vperm.xlu0 %309, %v307
        %v311 = vpop.permute.xlu0 %310
        %v313 = vmul.f32 %v306, %v311
        %v314 = vld [vmem:[%s2] sm:$0xff]
        %316 = vset.pattern.permute.xlu0 0
        %317 = vperm.xlu0 %316, %v314
        %v318 = vpop.permute.xlu0 %317
        %v320 = vadd.f32 %v313, %v318
        %v321 = vmax.f32 %v320, 0.0
        %v322 = vld [vmem:[%s3] sm:$0xf]
        %v323 = vld [vmem:[%s3 + $0x4] sm:$0xf]
        %v324 = vpack.c.bf16 %v321, %v321
        %v327 = vunpack.c.l.b16 %v322
        %v328 = vunpack.c.l.b16 %v323
        %v329 = vpack.c.b16 %v328, %v327
        %vm330 = vcmask 64512
        %v332 = vsel %vm330, %v329, 0
        %vm334 = vcmask 1043456
        %v336 = vsel %vm334, %v324, 0
        %338 = vmatpush.bf16.msra.mxu0 0
        %339 = vmatpush.bf16.msra.mxu0 0
        %340 = vmatpush.bf16.msra.mxu0 0
        %341 = vmatpush.bf16.msra.mxu0 0
        %342 = vmatpush.bf16.msra.mxu0 0
        %343 = vmatpush.bf16.msra.mxu0 0
        %344 = vmatpush.bf16.msra.mxu0 0
        %345 = vmatpush.bf16.msra.mxu0 %v336
        %346 = vmatmul.bf16.gmra.mxu0 %v332
        %v347 = vpop.f32.mrf.mxu0
        %v348 = vadd.f32 0.0, %v347
        %v349 = vpop.f32.mrf.mxu0
        %v350 = vadd.f32 0.0, %v349
        %351 = vdwg.mxu0
        %v352 = vpack.c.bf16 %v348, %v348
        %v353 = vpack.c.bf16 %v350, %v350
        %354 = vst [vmem:[%s263] sm:$0xf] %v352
        %355 = vst [vmem:[%s263 + $0x4] sm:$0xf] %v353
        %v356 = vld [vmem:[#allocation2] sm:$0xff]
        %v357 = vld [vmem:[#allocation2 + $0x8] sm:$0xff]
        %358 = vadd.xlane.f32.xlu0 %v348
        %v359 = vpop.xlane.xlu0 %358
        %360 = vadd.xlane.f32.xlu0 %v350
        %v361 = vpop.xlane.xlu0 %360
        %v362 = vadd.f32 %v356, %v359
        %v363 = vadd.f32 %v357, %v361
        %vm364 = vcmask 7168
        %365 = vst.msk [vmem:[#allocation2] sm:$0xff] %vm364, %v362
        %366 = vst.msk [vmem:[#allocation2 + $0x8] sm:$0xff] %vm364, %v363
        %v367 = vld [vmem:[#allocation3] sm:$0xff]
        %v368 = vld [vmem:[#allocation3 + $0x8] sm:$0xff]
        %v369 = vmul.f32 %v348, %v348
        %v370 = vmul.f32 %v350, %v350
        %371 = vadd.xlane.f32.xlu0 %v369
        %v372 = vpop.xlane.xlu0 %371
        %373 = vadd.xlane.f32.xlu0 %v370
        %v374 = vpop.xlane.xlu0 %373
        %v375 = vadd.f32 %v367, %v372
        %v376 = vadd.f32 %v368, %v374
        %377 = vst.msk [vmem:[#allocation3] sm:$0xff] %vm364, %v375
        %378 = vst.msk [vmem:[#allocation3 + $0x8] sm:$0xff] %vm364, %v376
        %p379 = scmp.eq.s32.totalorder %s23, 1
        // Predicated region
        $region41: #{bottleneck_d_forward.4} parent=35 // pred_check
          %p380 = pneg %p379
        $region42: #{bottleneck_d_forward.4} parent=35 // pred_check_branch
          %382 = sbr.rel (%p380) target = $region44
        $region43: #{bottleneck_d_forward.4} parent=35 // pred_region
          %v383 = vld [vmem:[#allocation2] sm:$0xff]
          %v384 = vld [vmem:[#allocation2 + $0x8] sm:$0xff]
          %385 = vst.msk [vmem:[%s290] sm:$0xff] %vm364, %v383
          %386 = vst.msk [vmem:[%s290 + $0x8] sm:$0xff] %vm364, %v384
          %v387 = vld [vmem:[#allocation3] sm:$0xff]
          %v388 = vld [vmem:[#allocation3 + $0x8] sm:$0xff]
          %389 = vst.msk [vmem:[%s295] sm:$0xff] %vm364, %v387
          %390 = vst.msk [vmem:[%s295 + $0x8] sm:$0xff] %vm364, %v388
        $region44: #{bottleneck_d_forward.4} parent=35 // pred_fallthru
          _
        %s391 = sand.u32 %s131, 1
        %s392 = sand.u32 %s131, 1
        %s393 = smul.addr %s392, 8
        %s394 = scalar_lea.vmem [#allocation4], %s393
        %p395 = scmp.lt.s32.totalorder %s22, 1
        %s396 = scalar_select %p395, %s22, 1
        %s397 = smul.addr %s396, 2
        %s398 = smul.addr %s397, 8
        %s399 = scalar_lea.vmem %s5, %s398
        %p400 = scmp.lt.s32.totalorder %s22, 1
        %s401 = scalar_select %p400, %s22, 1
        %s402 = smul.addr %s401, 2
        %s403 = smul.addr %s402, 8
        %s404 = scalar_lea.vmem %s6, %s403
        // Predicated region
        $region45: #{bottleneck_d_forward.4} parent=35 // pred_check
          %p405 = pneg %p141
        $region46: #{bottleneck_d_forward.4} parent=35 // pred_check_branch
          %407 = sbr.rel (%p405) target = $region48
        $region47: #{bottleneck_d_forward.4} parent=35 // pred_region
          %s408 = smul.addr %s22, 4
          %s409 = sadd.s32 %s23, %s408
          %s410 = smul.addr %s409, 4
          %s411 = scalar_lea.vmem %s4, %s410
          // Predicated region
          $region49: #{bottleneck_d_forward.4} parent=47 // pred_check
            _
          $region50: #{bottleneck_d_forward.4} parent=47 // pred_check_branch
            %413 = sbr.rel (0) target = $region52
          $region51: #{bottleneck_d_forward.4} parent=47 // pred_region
            // Predicated region
            $region53: #{bottleneck_d_forward.4} parent=51 // pred_check
              _
            $region54: #{bottleneck_d_forward.4} parent=51 // pred_check_branch
              %415 = sbr.rel target = $region56
            $region55: #{bottleneck_d_forward.4} parent=51 // pred_region
              // Predicated region
              $region68: #{bottleneck_d_forward.4} parent=55 // pred_check
                _
              $region69: #{bottleneck_d_forward.4} parent=55 // pred_check_branch
                %433 = sbr.rel (0) target = $region71
              $region70: #{bottleneck_d_forward.4} parent=55 // pred_region
                loop: start=0, step=1, limit=1
                $region72: #{bottleneck_d_forward.4} parent=70 // loop_pre_header
                  _
                $region73: #{bottleneck_d_forward.4} parent=70 // loop_header
                  %s435 = sphi 0, %s439
                  %p436 = scmp.ge.s32.totalorder %s435, 1
                  %s440 = sphi %s394, %s394
                  %s441 = sphi %s411, %s411
                $region74: #{bottleneck_d_forward.4} parent=70 // loop_header_branch
                  %438 = sbr.rel (%p436) target = $region78
                $region75: #{bottleneck_d_forward.4} parent=70 // loop_body
                  _
                $region76: #{bottleneck_d_forward.4} parent=70 // loop_footer
                  %s439 = sadd.s32 1, %s435
                $region77: #{bottleneck_d_forward.4} parent=70 // loop_footer_branch
                  %434 = sbr.rel target = $region73
                $region78: #{bottleneck_d_forward.4} parent=70 // loop_exit
                  _
                %s443 = ssub.s32 16, 1
                loop: start=0, step=1, limit=1
                $region79: #{bottleneck_d_forward.4} parent=70 // loop_pre_header
                  _
                $region80: #{bottleneck_d_forward.4} parent=70 // loop_header
                  %s445 = sphi 0, %s449
                  %p446 = scmp.ge.s32.totalorder %s445, 1
                  %s450 = sphi %s394, %s394
                  %s451 = sphi %s411, %s411
                $region81: #{bottleneck_d_forward.4} parent=70 // loop_header_branch
                  %448 = sbr.rel (%p446) target = $region85
                $region82: #{bottleneck_d_forward.4} parent=70 // loop_body
                  %v452 = vld [vmem:[%s450] sm:%s443]
                  %453 = vst [vmem:[%s451] sm:%s443] %v452
                  %v454 = vld [vmem:[%s450 + $0x4] sm:%s443]
                  %455 = vst [vmem:[%s451 + $0x8] sm:%s443] %v454
                $region83: #{bottleneck_d_forward.4} parent=70 // loop_footer
                  %s449 = sadd.s32 1, %s445
                $region84: #{bottleneck_d_forward.4} parent=70 // loop_footer_branch
                  %444 = sbr.rel target = $region80
                $region85: #{bottleneck_d_forward.4} parent=70 // loop_exit
                  _
              $region71: #{bottleneck_d_forward.4} parent=55 // pred_fallthru
                _
            $region56: #{bottleneck_d_forward.4} parent=51 // pred_fallthru
              _
            // Predicated region
            $region57: #{bottleneck_d_forward.4} parent=51 // pred_check
              _
            $region58: #{bottleneck_d_forward.4} parent=51 // pred_check_branch
              %417 = sbr.rel (0) target = $region60
            $region59: #{bottleneck_d_forward.4} parent=51 // pred_region
              %s419 = ssub.s32 16, 1
              loop: start=0, step=1, limit=1
              $region61: #{bottleneck_d_forward.4} parent=59 // loop_pre_header
                _
              $region62: #{bottleneck_d_forward.4} parent=59 // loop_header
                %s421 = sphi 0, %s425
                %p422 = scmp.ge.s32.totalorder %s421, 1
                %s426 = sphi %s394, %s394
                %s427 = sphi %s411, %s411
              $region63: #{bottleneck_d_forward.4} parent=59 // loop_header_branch
                %424 = sbr.rel (%p422) target = $region67
              $region64: #{bottleneck_d_forward.4} parent=59 // loop_body
                %v428 = vld [vmem:[%s426] sm:%s419]
                %429 = vst [vmem:[%s427] sm:%s419] %v428
                %v430 = vld [vmem:[%s426 + $0x4] sm:%s419]
                %431 = vst [vmem:[%s427 + $0x8] sm:%s419] %v430
              $region65: #{bottleneck_d_forward.4} parent=59 // loop_footer
                %s425 = sadd.s32 1, %s421
              $region66: #{bottleneck_d_forward.4} parent=59 // loop_footer_branch
                %420 = sbr.rel target = $region62
              $region67: #{bottleneck_d_forward.4} parent=59 // loop_exit
                _
            $region60: #{bottleneck_d_forward.4} parent=51 // pred_fallthru
              _
          $region52: #{bottleneck_d_forward.4} parent=47 // pred_fallthru
            _
          %456 = vnop
        $region48: #{bottleneck_d_forward.4} parent=35 // pred_fallthru
          _
        // Predicated region
        $region86: #{bottleneck_d_forward.4} parent=35 // pred_check
          %p457 = pneg %p167
        $region87: #{bottleneck_d_forward.4} parent=35 // pred_check_branch
          %459 = sbr.rel (%p457) target = $region89
        $region88: #{bottleneck_d_forward.4} parent=35 // pred_region
          _
        $region89: #{bottleneck_d_forward.4} parent=35 // pred_fallthru
          _
        // Predicated region
        $region90: #{bottleneck_d_forward.4} parent=35 // pred_check
          %p460 = pneg %p193
        $region91: #{bottleneck_d_forward.4} parent=35 // pred_check_branch
          %462 = sbr.rel (%p460) target = $region93
        $region92: #{bottleneck_d_forward.4} parent=35 // pred_region
          _
        $region93: #{bottleneck_d_forward.4} parent=35 // pred_fallthru
          _
      $region36: #{bottleneck_d_forward.4} parent=5 // pred_fallthru
        _
      %p463 = scmp.le.s32.totalorder 2, %s13
      // Predicated region
      $region94: #{bottleneck_d_forward.4} parent=5 // pred_check
        %p464 = pneg %p463
      $region95: #{bottleneck_d_forward.4} parent=5 // pred_check_branch
        %466 = sbr.rel (%p464) target = $region97
      $region96: #{bottleneck_d_forward.4} parent=5 // pred_region
        %s467 = ssub.s32 %s13, 2
        // Predicated region
        $region98: #{bottleneck_d_forward.4} parent=96 // pred_check
          %p468 = pneg %p147
        $region99: #{bottleneck_d_forward.4} parent=96 // pred_check_branch
          %470 = sbr.rel (%p468) target = $region101
        $region100: #{bottleneck_d_forward.4} parent=96 // pred_region
          %s471 = sand.u32 %s132, 1
          %s472 = sand.u32 %s132, 1
          %s473 = smul.addr %s472, 8
          %s474 = scalar_lea.vmem [#allocation4], %s473
        $region101: #{bottleneck_d_forward.4} parent=96 // pred_fallthru
          _
        // Predicated region
        $region102: #{bottleneck_d_forward.4} parent=96 // pred_check
          %p475 = pneg %p173
        $region103: #{bottleneck_d_forward.4} parent=96 // pred_check_branch
          %477 = sbr.rel (%p475) target = $region105
        $region104: #{bottleneck_d_forward.4} parent=96 // pred_region
          %p478 = scmp.lt.s32.totalorder %s24, 1
          %s479 = scalar_select %p478, %s24, 1
          %s480 = smul.addr %s479, 2
          %s481 = smul.addr %s480, 8
          %s482 = scalar_lea.vmem %s5, %s481
        $region105: #{bottleneck_d_forward.4} parent=96 // pred_fallthru
          _
        // Predicated region
        $region106: #{bottleneck_d_forward.4} parent=96 // pred_check
          %p483 = pneg %p199
        $region107: #{bottleneck_d_forward.4} parent=96 // pred_check_branch
          %485 = sbr.rel (%p483) target = $region109
        $region108: #{bottleneck_d_forward.4} parent=96 // pred_region
          %p486 = scmp.lt.s32.totalorder %s24, 1
          %s487 = scalar_select %p486, %s24, 1
          %s488 = smul.addr %s487, 2
          %s489 = smul.addr %s488, 8
          %s490 = scalar_lea.vmem %s6, %s489
        $region109: #{bottleneck_d_forward.4} parent=96 // pred_fallthru
          _
      $region97: #{bottleneck_d_forward.4} parent=5 // pred_fallthru
        _
    $region6: #{bottleneck_d_forward.4} parent=1 // loop_footer
      %s17 = sadd.s32 1, %s13
    $region7: #{bottleneck_d_forward.4} parent=1 // loop_footer_branch
      %12 = sbr.rel target = $region3
    $region8: #{bottleneck_d_forward.4} parent=1 // loop_exit
      _

</llo_original>
